<compile_context>
chip_gen: v7x
topology: tpu7x:2x2x1
jax: 0.10.0
libtpu: 0.0.40
codegen_flags: <defaults>
</compile_context>

<pallas_src>
import functools

import jax
import jax.numpy as jnp
from jax.experimental import pallas as pl
from jax.experimental.pallas import tpu as pltpu

LN_EPS = 1e-12  # BertConfig.layer_norm_eps default
VMEM_LIMIT = 32 * 1024 * 1024  # safe scoped-VMEM budget on v5e/v6e/v7x


# ----------------------------------------------------------------------------
# In-kernel math helpers
# ----------------------------------------------------------------------------
def _erf(x):
    # Abramowitz & Stegun 7.1.26 rational approximation (f32-level accuracy);
    # reproduces PyTorch's exact (erf-based) GELU using only Mosaic-lowerable ops.
    a1, a2, a3, a4, a5 = 0.254829592, -0.284496736, 1.421413741, -1.453152027, 1.061405429
    p = 0.3275911
    ax = jnp.abs(x)
    t = 1.0 / (1.0 + p * ax)
    poly = ((((a5 * t + a4) * t + a3) * t + a2) * t + a1) * t
    y = 1.0 - poly * jnp.exp(-ax * ax)
    return jnp.where(x >= 0, y, -y)


def _gelu_exact(x):
    return 0.5 * x * (1.0 + _erf(x * 0.7071067811865476))


def _layernorm_f32(y, gamma, beta, eps):
    mu = jnp.mean(y, axis=-1, keepdims=True)
    yc = y - mu
    var = jnp.mean(yc * yc, axis=-1, keepdims=True)
    inv = jax.lax.rsqrt(var + eps)
    return (yc * inv) * gamma + beta


def _pick_tile(dim, target, align):
    """Largest tile <= target that divides dim (full dim if it already fits)."""
    if dim <= target:
        return dim
    t = (target // align) * align
    while t >= align:
        if dim % t == 0:
            return t
        t -= align
    return dim  # fallback: un-tiled


# ----------------------------------------------------------------------------
# Tiled matmul (+ bias, + optional GELU) kernel:  y = act(x @ w + b)
# ----------------------------------------------------------------------------
def _mm_kernel(x_ref, w_ref, b_ref, o_ref, acc_ref, *, activation):
    k = pl.program_id(2)

    @pl.when(k == 0)
    def _():
        acc_ref[...] = jnp.zeros_like(acc_ref)

    acc_ref[...] += jnp.dot(x_ref[...], w_ref[...],
                            preferred_element_type=jnp.float32)

    @pl.when(k == pl.num_programs(2) - 1)
    def _():
        y = acc_ref[...] + b_ref[...]
        if activation == "gelu":
            y = _gelu_exact(y)
        o_ref[...] = y.astype(o_ref.dtype)


def linear(x, w, b, activation="none", out_dtype=jnp.float32,
           tm_target=256, tn_target=512, tk_target=512):
    """y = act(x @ w + b).  x: [M,K], w: [K,N], b: [N].  bf16 matmul, f32 acc."""
    M, K = x.shape
    N = w.shape[1]
    tm = _pick_tile(M, tm_target, 8)
    tn = _pick_tile(N, tn_target, 128)
    tk = _pick_tile(K, tk_target, 128)
    grid = (M // tm, N // tn, K // tk)
    return pl.pallas_call(
        functools.partial(_mm_kernel, activation=activation),
        grid=grid,
        in_specs=[
            pl.BlockSpec((tm, tk), lambda i, j, k: (i, k)),
            pl.BlockSpec((tk, tn), lambda i, j, k: (k, j)),
            pl.BlockSpec((1, tn), lambda i, j, k: (0, j)),
        ],
        out_specs=pl.BlockSpec((tm, tn), lambda i, j, k: (i, j)),
        out_shape=jax.ShapeDtypeStruct((M, N), out_dtype),
        scratch_shapes=[pltpu.VMEM((tm, tn), jnp.float32)],
        compiler_params=pltpu.CompilerParams(
            dimension_semantics=("parallel", "parallel", "arbitrary"),
            vmem_limit_bytes=VMEM_LIMIT,
        ),
    )(x.astype(jnp.bfloat16), w.astype(jnp.bfloat16),
      b.reshape(1, N).astype(jnp.float32))


# ----------------------------------------------------------------------------
# Tiled matmul + bias (+ optional GELU) + optional residual + LayerNorm kernel:
#   y = LN(act(x @ w + b) [+ residual])        (N = full hidden, not tiled)
# ----------------------------------------------------------------------------
def _mm_ln_kernel(*refs, activation, has_residual, eps):
    if has_residual:
        x_ref, w_ref, b_ref, r_ref, g_ref, beta_ref, o_ref, acc_ref = refs
    else:
        x_ref, w_ref, b_ref, g_ref, beta_ref, o_ref, acc_ref = refs
        r_ref = None
    k = pl.program_id(1)

    @pl.when(k == 0)
    def _():
        acc_ref[...] = jnp.zeros_like(acc_ref)

    acc_ref[...] += jnp.dot(x_ref[...], w_ref[...],
                            preferred_element_type=jnp.float32)

    @pl.when(k == pl.num_programs(1) - 1)
    def _():
        y = acc_ref[...] + b_ref[...]
        if activation == "gelu":
            y = _gelu_exact(y)
        if has_residual:
            y = y + r_ref[...].astype(jnp.float32)
        o_ref[...] = _layernorm_f32(y, g_ref[...], beta_ref[...], eps).astype(o_ref.dtype)


def linear_res_ln(x, w, b, residual, gamma, beta, activation="none", eps=LN_EPS,
                  tm_target=256, tk_target=512):
    """LN(act(x @ w + b) [+ residual]).  residual may be None (no zero streaming)."""
    M, K = x.shape
    N = w.shape[1]
    tm = _pick_tile(M, tm_target, 8)
    tk = _pick_tile(K, tk_target, 128)
    grid = (M // tm, K // tk)
    has_residual = residual is not None

    in_specs = [
        pl.BlockSpec((tm, tk), lambda i, k: (i, k)),
        pl.BlockSpec((tk, N), lambda i, k: (k, 0)),
        pl.BlockSpec((1, N), lambda i, k: (0, 0)),
    ]
    args = [x.astype(jnp.bfloat16), w.astype(jnp.bfloat16),
            b.reshape(1, N).astype(jnp.float32)]
    if has_residual:
        in_specs.append(pl.BlockSpec((tm, N), lambda i, k: (i, 0)))
        args.append(residual.astype(jnp.float32))
    in_specs += [pl.BlockSpec((1, N), lambda i, k: (0, 0)),
                 pl.BlockSpec((1, N), lambda i, k: (0, 0))]
    args += [gamma.reshape(1, N).astype(jnp.float32),
             beta.reshape(1, N).astype(jnp.float32)]

    return pl.pallas_call(
        functools.partial(_mm_ln_kernel, activation=activation,
                          has_residual=has_residual, eps=eps),
        grid=grid,
        in_specs=in_specs,
        out_specs=pl.BlockSpec((tm, N), lambda i, k: (i, 0)),
        out_shape=jax.ShapeDtypeStruct((M, N), jnp.float32),
        scratch_shapes=[pltpu.VMEM((tm, N), jnp.float32)],
        compiler_params=pltpu.CompilerParams(
            dimension_semantics=("parallel", "arbitrary"),
            vmem_limit_bytes=VMEM_LIMIT,
        ),
    )(*args)


# ----------------------------------------------------------------------------
# Row-tiled LayerNorm (no residual) — used for the embedding LayerNorm only
# ----------------------------------------------------------------------------
def _ln_kernel(x_ref, g_ref, b_ref, o_ref, *, eps):
    x = x_ref[...].astype(jnp.float32)
    o_ref[...] = _layernorm_f32(x, g_ref[...], b_ref[...], eps).astype(o_ref.dtype)


def layernorm(x, gamma, beta, eps=LN_EPS, tm_target=1024):
    M, H = x.shape
    tm = _pick_tile(M, tm_target, 8)
    return pl.pallas_call(
        functools.partial(_ln_kernel, eps=eps),
        grid=(M // tm,),
        in_specs=[
            pl.BlockSpec((tm, H), lambda i: (i, 0)),
            pl.BlockSpec((1, H), lambda i: (0, 0)),
            pl.BlockSpec((1, H), lambda i: (0, 0)),
        ],
        out_specs=pl.BlockSpec((tm, H), lambda i: (i, 0)),
        out_shape=jax.ShapeDtypeStruct((M, H), jnp.float32),
        compiler_params=pltpu.CompilerParams(
            dimension_semantics=("parallel",),
            vmem_limit_bytes=VMEM_LIMIT,
        ),
    )(x, gamma.reshape(1, H), beta.reshape(1, H))


# ----------------------------------------------------------------------------
# Multi-head self-attention: reads the fused [B, S, 3H] QKV slab, loops heads
# in-kernel (static slices), writes one lane-dense [S, H] context per batch.
# ----------------------------------------------------------------------------
def _attn_kernel(qkv_ref, m_ref, o_ref, *, n_heads, head_dim, hidden, scale):
    qkv = qkv_ref[0]          # (S, 3H) bf16
    mask = m_ref[0]           # (1, S)  f32 additive (HF extended attention mask)
    ctxs = []
    for h in range(n_heads):
        q = qkv[:, h * head_dim:(h + 1) * head_dim]
        k = qkv[:, hidden + h * head_dim:hidden + (h + 1) * head_dim]
        v = qkv[:, 2 * hidden + h * head_dim:2 * hidden + (h + 1) * head_dim]
        s = jax.lax.dot_general(q, k, (((1,), (1,)), ((), ())),
                                preferred_element_type=jnp.float32)
        s = s * scale + mask                      # f32 mask add (no bf16 overflow)
        s = s - jnp.max(s, axis=-1, keepdims=True)
        p = jnp.exp(s)
        p = p * pl.reciprocal(jnp.sum(p, axis=-1, keepdims=True), approx=True)
        ctxs.append(jnp.dot(p.astype(jnp.bfloat16), v,
                            preferred_element_type=jnp.float32))
    o_ref[0] = jnp.concatenate(ctxs, axis=-1).astype(o_ref.dtype)


def attention(qkv, mask_add, n_heads, scale):
    """qkv: [B, S, 3H] bf16; mask_add: [B, 1, S] f32 additive. Returns [B, S, H] bf16."""
    B, S, threeH = qkv.shape
    hidden = threeH // 3
    head_dim = hidden // n_heads
    return pl.pallas_call(
        functools.partial(_attn_kernel, n_heads=n_heads, head_dim=head_dim,
                          hidden=hidden, scale=scale),
        grid=(B,),
        in_specs=[
            pl.BlockSpec((1, S, threeH), lambda b: (b, 0, 0)),
            pl.BlockSpec((1, 1, S), lambda b: (b, 0, 0)),
        ],
        out_specs=pl.BlockSpec((1, S, hidden), lambda b: (b, 0, 0)),
        out_shape=jax.ShapeDtypeStruct((B, S, hidden), jnp.bfloat16),
        compiler_params=pltpu.CompilerParams(
            dimension_semantics=("parallel",),
            vmem_limit_bytes=VMEM_LIMIT,
        ),
    )(qkv, mask_add)


# ----------------------------------------------------------------------------
# Parameters (deterministic synthetic init; shapes follow BertModel + MLM head)
# ----------------------------------------------------------------------------
def init_params(key, vocab, hidden, n_layers, inter, max_pos, type_vocab):
    keys = iter(jax.random.split(key, 16 + 16 * n_layers))

    def w(shape, scale=0.02):
        return (scale * jax.random.normal(next(keys), shape)).astype(jnp.float32)

    def zeros(n):
        return jnp.zeros((n,), jnp.float32)

    def ones(n):
        return jnp.ones((n,), jnp.float32)

    params = {
        "word_emb": w((vocab, hidden)),
        "pos_emb": w((max_pos, hidden)),
        "type_emb": w((type_vocab, hidden)),
        "emb_ln_g": ones(hidden),
        "emb_ln_b": zeros(hidden),
        "layers": [],
        # BertOnlyMLMHead: transform dense + gelu + LN, then decoder (hidden->vocab) + bias
        "Wt": w((hidden, hidden)),
        "bt": zeros(hidden),
        "t_ln_g": ones(hidden),
        "t_ln_b": zeros(hidden),
        "Wdec": w((hidden, vocab)),
        "bdec": zeros(vocab),
    }
    for _ in range(n_layers):
        wq, wk, wv = w((hidden, hidden)), w((hidden, hidden)), w((hidden, hidden))
        params["layers"].append({
            # fused QKV projection weight/bias: [H, 3H] / [3H]
            "Wqkv": jnp.concatenate([wq, wk, wv], axis=1),
            "bqkv": zeros(3 * hidden),
            "Wao": w((hidden, hidden)), "bao": zeros(hidden),
            "ln1_g": ones(hidden), "ln1_b": zeros(hidden),
            "Wi": w((hidden, inter)), "bi": zeros(inter),
            "Wo": w((inter, hidden)), "bo": zeros(hidden),
            "ln2_g": ones(hidden), "ln2_b": zeros(hidden),
        })
    return params


# ----------------------------------------------------------------------------
# Model forward (= TRAFICA_PreTrain.forward)
# ----------------------------------------------------------------------------
def trafica_pretrain_forward(params, input_ids, attention_mask, token_type_ids,
                             *, n_heads):
    B, S = input_ids.shape
    hidden = params["word_emb"].shape[1]
    hd = hidden // n_heads

    # ---- BertEmbeddings (gathers = plain-JAX glue; LayerNorm in a Pallas kernel) ----
    emb = (params["word_emb"][input_ids]
           + params["pos_emb"][jnp.arange(S)][None, :, :]
           + params["type_emb"][token_type_ids])
    x = emb.reshape(B * S, hidden).astype(jnp.float32)
    h = layernorm(x, params["emb_ln_g"], params["emb_ln_b"])

    # HF extended attention mask: (1 - mask) * finfo(f32).min, additive, kept in f32
    mask_add = (1.0 - attention_mask.astype(jnp.float32)) * jnp.finfo(jnp.float32).min
    mask_add = mask_add.reshape(B, 1, S)
    scale = 1.0 / (hd ** 0.5)

    # ---- BertEncoder layers ----
    for lp in params["layers"]:
        # fused QKV projection -> [B*S, 3H] (bf16, feeds attention directly)
        qkv = linear(h, lp["Wqkv"], lp["bqkv"], out_dtype=jnp.bfloat16)
        ctx = attention(qkv.reshape(B, S, 3 * hidden), mask_add, n_heads, scale)
        ctx2d = ctx.reshape(B * S, hidden)
        # BertSelfOutput: dense + residual + LayerNorm (fused)
        h1 = linear_res_ln(ctx2d, lp["Wao"], lp["bao"], h, lp["ln1_g"], lp["ln1_b"])
        # BertIntermediate: dense + GELU (bf16 out feeds next matmul)
        inter = linear(h1, lp["Wi"], lp["bi"], activation="gelu",
                       out_dtype=jnp.bfloat16)
        # BertOutput: dense + residual + LayerNorm (fused)
        h = linear_res_ln(inter, lp["Wo"], lp["bo"], h1, lp["ln2_g"], lp["ln2_b"])

    last_hidden_state = h.reshape(B, S, hidden)

    # ---- BertOnlyMLMHead ----
    # transform: dense + GELU + LayerNorm (fused, no residual -> no zero streaming)
    t = linear_res_ln(h, params["Wt"], params["bt"], None,
                      params["t_ln_g"], params["t_ln_b"], activation="gelu")
    # decoder: hidden -> vocab (largest matmul; N tiled lane-dense, weight streamed)
    logits = linear(t, params["Wdec"], params["bdec"],
                    tn_target=2048).reshape(B, S, -1)

    # TRAFICA_PreTrain.forward returns (logit, out); `out` is represented here by
    # its last_hidden_state (add_pooling_layer=False, no other tensors requested).
    return logits, last_hidden_state


# ----------------------------------------------------------------------------
if __name__ == "__main__":
    VOCAB, HIDDEN, N_LAYERS, N_HEADS, INTER = 128, 32, 2, 2, 64
    MAX_POS, TYPE_VOCAB = 16, 2
    B, S = 2, 8

    key = jax.random.PRNGKey(0)
    pkey, ikey = jax.random.split(key)
    params = init_params(pkey, VOCAB, HIDDEN, N_LAYERS, INTER, MAX_POS, TYPE_VOCAB)

    input_ids = jax.random.randint(ikey, (B, S), 0, VOCAB, dtype=jnp.int32)
    attention_mask = jnp.ones((B, S), jnp.int32)
    token_type_ids = jnp.zeros((B, S), jnp.int32)

    fwd = jax.jit(functools.partial(trafica_pretrain_forward, n_heads=N_HEADS))
    logits, last_hidden = fwd(params, input_ids, attention_mask, token_type_ids)
    jax.block_until_ready(logits)
    jax.block_until_ready(last_hidden)

    assert logits.shape == (B, S, VOCAB)
    assert last_hidden.shape == (B, S, HIDDEN)
    assert bool(jnp.all(jnp.isfinite(logits)))
    print("KERNEL_OK")
</pallas_src>

<mosaic_0001>
module attributes {stable_mosaic.version = 11 : i64} {
  func.func @_ln_kernel(%arg0: i32, %arg1: memref<16x32xf32, #tpu.memory_space<vmem>>, %arg2: memref<1x32xf32, #tpu.memory_space<vmem>>, %arg3: memref<1x32xf32, #tpu.memory_space<vmem>>, %arg4: memref<16x32xf32, #tpu.memory_space<vmem>>) attributes {dimension_semantics = [#tpu.dimension_semantics<parallel>], iteration_bounds = array<i64: 1>, scalar_prefetch = 0 : i64, scratch_operands = 0 : i64, tpu.core_type = #tpu.core_type<tc>, window_params = [{transform_indices = @transform_0, window_bounds = array<i64: 16, 32>}, {pipeline_mode = #tpu.pipeline_mode<synchronous>, transform_indices = @transform_1, window_bounds = array<i64: 1, 32>}, {pipeline_mode = #tpu.pipeline_mode<synchronous>, transform_indices = @transform_2, window_bounds = array<i64: 1, 32>}, {transform_indices = @transform_3, window_bounds = array<i64: 16, 32>}]} {
    %c0 = arith.constant 0 : index
    %c0_0 = arith.constant 0 : index
    %0 = vector.load %arg1[%c0, %c0_0] : memref<16x32xf32, #tpu.memory_space<vmem>>, vector<16x32xf32>
    %c0_1 = arith.constant 0 : index
    %c0_2 = arith.constant 0 : index
    %1 = vector.load %arg2[%c0_1, %c0_2] : memref<1x32xf32, #tpu.memory_space<vmem>>, vector<1x32xf32>
    %c0_3 = arith.constant 0 : index
    %c0_4 = arith.constant 0 : index
    %2 = vector.load %arg3[%c0_3, %c0_4] : memref<1x32xf32, #tpu.memory_space<vmem>>, vector<1x32xf32>
    %cst = arith.constant dense<0.000000e+00> : vector<16xf32>
    %3 = vector.multi_reduction <add>, %0, %cst [1] : vector<16x32xf32> to vector<16xf32>
    %4 = vector.shape_cast %3 : vector<16xf32> to vector<16x1xf32>
    %cst_5 = arith.constant 3.200000e+01 : f32
    %5 = vector.broadcast %cst_5 : f32 to vector<16x1xf32>
    %6 = arith.divf %4, %5 : vector<16x1xf32>
    %7 = vector.broadcast %6 : vector<16x1xf32> to vector<16x32xf32>
    %8 = arith.subf %0, %7 : vector<16x32xf32>
    %9 = arith.mulf %8, %8 : vector<16x32xf32>
    %cst_6 = arith.constant dense<0.000000e+00> : vector<16xf32>
    %10 = vector.multi_reduction <add>, %9, %cst_6 [1] : vector<16x32xf32> to vector<16xf32>
    %11 = vector.shape_cast %10 : vector<16xf32> to vector<16x1xf32>
    %cst_7 = arith.constant 3.200000e+01 : f32
    %12 = vector.broadcast %cst_7 : f32 to vector<16x1xf32>
    %13 = arith.divf %11, %12 : vector<16x1xf32>
    %cst_8 = arith.constant 9.99999996E-13 : f32
    %14 = vector.broadcast %cst_8 : f32 to vector<16x1xf32>
    %15 = arith.addf %13, %14 : vector<16x1xf32>
    %16 = math.rsqrt %15 : vector<16x1xf32>
    %17 = vector.broadcast %16 : vector<16x1xf32> to vector<16x32xf32>
    %18 = arith.mulf %8, %17 : vector<16x32xf32>
    %19 = vector.broadcast %1 : vector<1x32xf32> to vector<16x32xf32>
    %20 = arith.mulf %18, %19 : vector<16x32xf32>
    %21 = vector.broadcast %2 : vector<1x32xf32> to vector<16x32xf32>
    %22 = arith.addf %20, %21 : vector<16x32xf32>
    %c0_9 = arith.constant 0 : index
    %c0_10 = arith.constant 0 : index
    %23 = vector.load %arg4[%c0_9, %c0_10] : memref<16x32xf32, #tpu.memory_space<vmem>>, vector<16x32xf32>
    tpu.vector_store %arg4[%c0_9, %c0_10], %22 {strides = array<i32>} : memref<16x32xf32, #tpu.memory_space<vmem>>, vector<16x32xf32>,
    return
  }
  func.func @transform_0(%arg0: i32) -> (i32, i32) {
    %c0_i32 = arith.constant 0 : i32
    %c0_i32_0 = arith.constant 0 : i32
    return %arg0, %c0_i32 : i32, i32
  }
  func.func @transform_1(%arg0: i32) -> (i32, i32) {
    %c0_i32 = arith.constant 0 : i32
    %c0_i32_0 = arith.constant 0 : i32
    %c0_i32_1 = arith.constant 0 : i32
    return %c0_i32, %c0_i32_0 : i32, i32
  }
  func.func @transform_2(%arg0: i32) -> (i32, i32) {
    %c0_i32 = arith.constant 0 : i32
    %c0_i32_0 = arith.constant 0 : i32
    %c0_i32_1 = arith.constant 0 : i32
    return %c0_i32, %c0_i32_0 : i32, i32
  }
  func.func @transform_3(%arg0: i32) -> (i32, i32) {
    %c0_i32 = arith.constant 0 : i32
    %c0_i32_0 = arith.constant 0 : i32
    return %arg0, %c0_i32 : i32, i32
  }
}

module attributes {stable_mosaic.version = 11 : i64} {
  func.func @_mm_kernel(%arg0: i32, %arg1: i32, %arg2: i32, %arg3: memref<16x32xbf16, #tpu.memory_space<vmem>>, %arg4: memref<32x96xbf16, #tpu.memory_space<vmem>>, %arg5: memref<1x96xf32, #tpu.memory_space<vmem>>, %arg6: memref<16x96xbf16, #tpu.memory_space<vmem>>, %arg7: memref<16x96xf32, #tpu.memory_space<vmem>>) attributes {dimension_semantics = [#tpu.dimension_semantics<parallel>, #tpu.dimension_semantics<parallel>, #tpu.dimension_semantics<arbitrary>], iteration_bounds = array<i64: 1, 1, 1>, scalar_prefetch = 0 : i64, scratch_operands = 1 : i64, tpu.core_type = #tpu.core_type<tc>, window_params = [{transform_indices = @transform_0, window_bounds = array<i64: 16, 32>}, {transform_indices = @transform_1, window_bounds = array<i64: 32, 96>}, {transform_indices = @transform_2, window_bounds = array<i64: 1, 96>}, {transform_indices = @transform_3, window_bounds = array<i64: 16, 96>}]} {
    %c0_i32 = arith.constant 0 : i32
    %0 = arith.cmpi eq, %arg2, %c0_i32 : i32
    %1 = arith.extui %0 : i1 to i32
    %c0_i32_0 = arith.constant 0 : i32
    %2 = arith.cmpi ne, %1, %c0_i32_0 : i32
    scf.if %2 {
      %cst_10 = arith.constant 0.000000e+00 : f32
      %12 = vector.broadcast %cst_10 : f32 to vector<16x96xf32>
      %c0_11 = arith.constant 0 : index
      %c0_12 = arith.constant 0 : index
      %13 = vector.load %arg7[%c0_11, %c0_12] : memref<16x96xf32, #tpu.memory_space<vmem>>, vector<16x96xf32>
      tpu.vector_store %arg7[%c0_11, %c0_12], %12 {strides = array<i32>} : memref<16x96xf32, #tpu.memory_space<vmem>>, vector<16x96xf32>,
    } else {
    }
    %c0 = arith.constant 0 : index
    %c0_1 = arith.constant 0 : index
    %3 = vector.load %arg7[%c0, %c0_1] : memref<16x96xf32, #tpu.memory_space<vmem>>, vector<16x96xf32>
    %c0_2 = arith.constant 0 : index
    %c0_3 = arith.constant 0 : index
    %4 = vector.load %arg3[%c0_2, %c0_3] : memref<16x32xbf16, #tpu.memory_space<vmem>>, vector<16x32xbf16>
    %c0_4 = arith.constant 0 : index
    %c0_5 = arith.constant 0 : index
    %5 = vector.load %arg4[%c0_4, %c0_5] : memref<32x96xbf16, #tpu.memory_space<vmem>>, vector<32x96xbf16>
    %cst = arith.constant dense<0.000000e+00> : vector<16x96xf32>
    %6 = tpu.matmul %4, %5, %cst {dimension_numbers = #tpu.dot_dimension_numbers<[1], [0], [0], [1], [0, 0, 1, 1], [], []>} : vector<16x32xbf16>, vector<32x96xbf16>, vector<16x96xf32> -> vector<16x96xf32>
    %7 = arith.addf %3, %6 : vector<16x96xf32>
    %c0_6 = arith.constant 0 : index
    %c0_7 = arith.constant 0 : index
    %8 = vector.load %arg7[%c0_6, %c0_7] : memref<16x96xf32, #tpu.memory_space<vmem>>, vector<16x96xf32>
    tpu.vector_store %arg7[%c0_6, %c0_7], %7 {strides = array<i32>} : memref<16x96xf32, #tpu.memory_space<vmem>>, vector<16x96xf32>,
    %c0_i32_8 = arith.constant 0 : i32
    %9 = arith.cmpi eq, %arg2, %c0_i32_8 : i32
    %10 = arith.extui %9 : i1 to i32
    %c0_i32_9 = arith.constant 0 : i32
    %11 = arith.cmpi ne, %10, %c0_i32_9 : i32
    scf.if %11 {
      %c0_10 = arith.constant 0 : index
      %c0_11 = arith.constant 0 : index
      %12 = vector.load %arg7[%c0_10, %c0_11] : memref<16x96xf32, #tpu.memory_space<vmem>>, vector<16x96xf32>
      %c0_12 = arith.constant 0 : index
      %c0_13 = arith.constant 0 : index
      %13 = vector.load %arg5[%c0_12, %c0_13] : memref<1x96xf32, #tpu.memory_space<vmem>>, vector<1x96xf32>
      %14 = vector.broadcast %13 : vector<1x96xf32> to vector<16x96xf32>
      %15 = arith.addf %12, %14 : vector<16x96xf32>
      %16 = arith.truncf %15 : vector<16x96xf32> to vector<16x96xbf16>
      %c0_14 = arith.constant 0 : index
      %c0_15 = arith.constant 0 : index
      %17 = vector.load %arg6[%c0_14, %c0_15] : memref<16x96xbf16, #tpu.memory_space<vmem>>, vector<16x96xbf16>
      tpu.vector_store %arg6[%c0_14, %c0_15], %16 {strides = array<i32>} : memref<16x96xbf16, #tpu.memory_space<vmem>>, vector<16x96xbf16>,
    } else {
    }
    return
  }
  func.func @transform_0(%arg0: i32, %arg1: i32, %arg2: i32) -> (i32, i32) {
    %c0_i32 = arith.constant 0 : i32
    return %arg0, %arg2 : i32, i32
  }
  func.func @transform_1(%arg0: i32, %arg1: i32, %arg2: i32) -> (i32, i32) {
    %c0_i32 = arith.constant 0 : i32
    return %arg2, %arg1 : i32, i32
  }
  func.func @transform_2(%arg0: i32, %arg1: i32, %arg2: i32) -> (i32, i32) {
    %c0_i32 = arith.constant 0 : i32
    %c0_i32_0 = arith.constant 0 : i32
    return %c0_i32, %arg1 : i32, i32
  }
  func.func @transform_3(%arg0: i32, %arg1: i32, %arg2: i32) -> (i32, i32) {
    %c0_i32 = arith.constant 0 : i32
    return %arg0, %arg1 : i32, i32
  }
}

module attributes {stable_mosaic.version = 11 : i64} {
  func.func @_mm_ln_kernel(%arg0: i32, %arg1: i32, %arg2: memref<16x32xbf16, #tpu.memory_space<vmem>>, %arg3: memref<32x32xbf16, #tpu.memory_space<vmem>>, %arg4: memref<1x32xf32, #tpu.memory_space<vmem>>, %arg5: memref<16x32xf32, #tpu.memory_space<vmem>>, %arg6: memref<1x32xf32, #tpu.memory_space<vmem>>, %arg7: memref<1x32xf32, #tpu.memory_space<vmem>>, %arg8: memref<16x32xf32, #tpu.memory_space<vmem>>, %arg9: memref<16x32xf32, #tpu.memory_space<vmem>>) attributes {dimension_semantics = [#tpu.dimension_semantics<parallel>, #tpu.dimension_semantics<arbitrary>], iteration_bounds = array<i64: 1, 1>, scalar_prefetch = 0 : i64, scratch_operands = 1 : i64, tpu.core_type = #tpu.core_type<tc>, window_params = [{transform_indices = @transform_0, window_bounds = array<i64: 16, 32>}, {transform_indices = @transform_1, window_bounds = array<i64: 32, 32>}, {pipeline_mode = #tpu.pipeline_mode<synchronous>, transform_indices = @transform_2, window_bounds = array<i64: 1, 32>}, {transform_indices = @transform_3, window_bounds = array<i64: 16, 32>}, {pipeline_mode = #tpu.pipeline_mode<synchronous>, transform_indices = @transform_4, window_bounds = array<i64: 1, 32>}, {pipeline_mode = #tpu.pipeline_mode<synchronous>, transform_indices = @transform_5, window_bounds = array<i64: 1, 32>}, {transform_indices = @transform_6, window_bounds = array<i64: 16, 32>}]} {
    %c0_i32 = arith.constant 0 : i32
    %0 = arith.cmpi eq, %arg1, %c0_i32 : i32
    %1 = arith.extui %0 : i1 to i32
    %c0_i32_0 = arith.constant 0 : i32
    %2 = arith.cmpi ne, %1, %c0_i32_0 : i32
    scf.if %2 {
      %cst_10 = arith.constant 0.000000e+00 : f32
      %12 = vector.broadcast %cst_10 : f32 to vector<16x32xf32>
      %c0_11 = arith.constant 0 : index
      %c0_12 = arith.constant 0 : index
      %13 = vector.load %arg9[%c0_11, %c0_12] : memref<16x32xf32, #tpu.memory_space<vmem>>, vector<16x32xf32>
      tpu.vector_store %arg9[%c0_11, %c0_12], %12 {strides = array<i32>} : memref<16x32xf32, #tpu.memory_space<vmem>>, vector<16x32xf32>,
    } else {
    }
    %c0 = arith.constant 0 : index
    %c0_1 = arith.constant 0 : index
    %3 = vector.load %arg9[%c0, %c0_1] : memref<16x32xf32, #tpu.memory_space<vmem>>, vector<16x32xf32>
    %c0_2 = arith.constant 0 : index
    %c0_3 = arith.constant 0 : index
    %4 = vector.load %arg2[%c0_2, %c0_3] : memref<16x32xbf16, #tpu.memory_space<vmem>>, vector<16x32xbf16>
    %c0_4 = arith.constant 0 : index
    %c0_5 = arith.constant 0 : index
    %5 = vector.load %arg3[%c0_4, %c0_5] : memref<32x32xbf16, #tpu.memory_space<vmem>>, vector<32x32xbf16>
    %cst = arith.constant dense<0.000000e+00> : vector<16x32xf32>
    %6 = tpu.matmul %4, %5, %cst {dimension_numbers = #tpu.dot_dimension_numbers<[1], [0], [0], [1], [0, 0, 1, 1], [], []>} : vector<16x32xbf16>, vector<32x32xbf16>, vector<16x32xf32> -> vector<16x32xf32>
    %7 = arith.addf %3, %6 : vector<16x32xf32>
    %c0_6 = arith.constant 0 : index
    %c0_7 = arith.constant 0 : index
    %8 = vector.load %arg9[%c0_6, %c0_7] : memref<16x32xf32, #tpu.memory_space<vmem>>, vector<16x32xf32>
    tpu.vector_store %arg9[%c0_6, %c0_7], %7 {strides = array<i32>} : memref<16x32xf32, #tpu.memory_space<vmem>>, vector<16x32xf32>,
    %c0_i32_8 = arith.constant 0 : i32
    %9 = arith.cmpi eq, %arg1, %c0_i32_8 : i32
    %10 = arith.extui %9 : i1 to i32
    %c0_i32_9 = arith.constant 0 : i32
    %11 = arith.cmpi ne, %10, %c0_i32_9 : i32
    scf.if %11 {
      %c0_10 = arith.constant 0 : index
      %c0_11 = arith.constant 0 : index
      %12 = vector.load %arg9[%c0_10, %c0_11] : memref<16x32xf32, #tpu.memory_space<vmem>>, vector<16x32xf32>
      %c0_12 = arith.constant 0 : index
      %c0_13 = arith.constant 0 : index
      %13 = vector.load %arg4[%c0_12, %c0_13] : memref<1x32xf32, #tpu.memory_space<vmem>>, vector<1x32xf32>
      %14 = vector.broadcast %13 : vector<1x32xf32> to vector<16x32xf32>
      %15 = arith.addf %12, %14 : vector<16x32xf32>
      %c0_14 = arith.constant 0 : index
      %c0_15 = arith.constant 0 : index
      %16 = vector.load %arg5[%c0_14, %c0_15] : memref<16x32xf32, #tpu.memory_space<vmem>>, vector<16x32xf32>
      %17 = arith.addf %15, %16 : vector<16x32xf32>
      %c0_16 = arith.constant 0 : index
      %c0_17 = arith.constant 0 : index
      %18 = vector.load %arg6[%c0_16, %c0_17] : memref<1x32xf32, #tpu.memory_space<vmem>>, vector<1x32xf32>
      %c0_18 = arith.constant 0 : index
      %c0_19 = arith.constant 0 : index
      %19 = vector.load %arg7[%c0_18, %c0_19] : memref<1x32xf32, #tpu.memory_space<vmem>>, vector<1x32xf32>
      %cst_20 = arith.constant dense<0.000000e+00> : vector<16xf32>
      %20 = vector.multi_reduction <add>, %17, %cst_20 [1] : vector<16x32xf32> to vector<16xf32>
      %21 = vector.shape_cast %20 : vector<16xf32> to vector<16x1xf32>
      %cst_21 = arith.constant 3.200000e+01 : f32
      %22 = vector.broadcast %cst_21 : f32 to vector<16x1xf32>
      %23 = arith.divf %21, %22 : vector<16x1xf32>
      %24 = vector.broadcast %23 : vector<16x1xf32> to vector<16x32xf32>
      %25 = arith.subf %17, %24 : vector<16x32xf32>
      %26 = arith.mulf %25, %25 : vector<16x32xf32>
      %cst_22 = arith.constant dense<0.000000e+00> : vector<16xf32>
      %27 = vector.multi_reduction <add>, %26, %cst_22 [1] : vector<16x32xf32> to vector<16xf32>
      %28 = vector.shape_cast %27 : vector<16xf32> to vector<16x1xf32>
      %cst_23 = arith.constant 3.200000e+01 : f32
      %29 = vector.broadcast %cst_23 : f32 to vector<16x1xf32>
      %30 = arith.divf %28, %29 : vector<16x1xf32>
      %cst_24 = arith.constant 9.99999996E-13 : f32
      %31 = vector.broadcast %cst_24 : f32 to vector<16x1xf32>
      %32 = arith.addf %30, %31 : vector<16x1xf32>
      %33 = math.rsqrt %32 : vector<16x1xf32>
      %34 = vector.broadcast %33 : vector<16x1xf32> to vector<16x32xf32>
      %35 = arith.mulf %25, %34 : vector<16x32xf32>
      %36 = vector.broadcast %18 : vector<1x32xf32> to vector<16x32xf32>
      %37 = arith.mulf %35, %36 : vector<16x32xf32>
      %38 = vector.broadcast %19 : vector<1x32xf32> to vector<16x32xf32>
      %39 = arith.addf %37, %38 : vector<16x32xf32>
      %c0_25 = arith.constant 0 : index
      %c0_26 = arith.constant 0 : index
      %40 = vector.load %arg8[%c0_25, %c0_26] : memref<16x32xf32, #tpu.memory_space<vmem>>, vector<16x32xf32>
      tpu.vector_store %arg8[%c0_25, %c0_26], %39 {strides = array<i32>} : memref<16x32xf32, #tpu.memory_space<vmem>>, vector<16x32xf32>,
    } else {
    }
    return
  }
  func.func @transform_0(%arg0: i32, %arg1: i32) -> (i32, i32) {
    %c0_i32 = arith.constant 0 : i32
    return %arg0, %arg1 : i32, i32
  }
  func.func @transform_1(%arg0: i32, %arg1: i32) -> (i32, i32) {
    %c0_i32 = arith.constant 0 : i32
    %c0_i32_0 = arith.constant 0 : i32
    return %arg1, %c0_i32 : i32, i32
  }
  func.func @transform_2(%arg0: i32, %arg1: i32) -> (i32, i32) {
    %c0_i32 = arith.constant 0 : i32
    %c0_i32_0 = arith.constant 0 : i32
    %c0_i32_1 = arith.constant 0 : i32
    return %c0_i32, %c0_i32_0 : i32, i32
  }
  func.func @transform_3(%arg0: i32, %arg1: i32) -> (i32, i32) {
    %c0_i32 = arith.constant 0 : i32
    %c0_i32_0 = arith.constant 0 : i32
    return %arg0, %c0_i32 : i32, i32
  }
  func.func @transform_4(%arg0: i32, %arg1: i32) -> (i32, i32) {
    %c0_i32 = arith.constant 0 : i32
    %c0_i32_0 = arith.constant 0 : i32
    %c0_i32_1 = arith.constant 0 : i32
    return %c0_i32, %c0_i32_0 : i32, i32
  }
  func.func @transform_5(%arg0: i32, %arg1: i32) -> (i32, i32) {
    %c0_i32 = arith.constant 0 : i32
    %c0_i32_0 = arith.constant 0 : i32
    %c0_i32_1 = arith.constant 0 : i32
    return %c0_i32, %c0_i32_0 : i32, i32
  }
  func.func @transform_6(%arg0: i32, %arg1: i32) -> (i32, i32) {
    %c0_i32 = arith.constant 0 : i32
    %c0_i32_0 = arith.constant 0 : i32
    return %arg0, %c0_i32 : i32, i32
  }
}

module attributes {stable_mosaic.version = 11 : i64} {
  func.func @_attn_kernel(%arg0: i32, %arg1: memref<1x8x96xbf16, #tpu.memory_space<vmem>>, %arg2: memref<1x1x8xf32, #tpu.memory_space<vmem>>, %arg3: memref<1x8x32xbf16, #tpu.memory_space<vmem>>) attributes {dimension_semantics = [#tpu.dimension_semantics<parallel>], iteration_bounds = array<i64: 2>, scalar_prefetch = 0 : i64, scratch_operands = 0 : i64, tpu.core_type = #tpu.core_type<tc>, window_params = [{transform_indices = @transform_0, window_bounds = array<i64: 1, 8, 96>}, {transform_indices = @transform_1, window_bounds = array<i64: 1, 1, 8>}, {transform_indices = @transform_2, window_bounds = array<i64: 1, 8, 32>}]} {
    %c0 = arith.constant 0 : index
    %c0_0 = arith.constant 0 : index
    %c0_1 = arith.constant 0 : index
    %0 = vector.load %arg1[%c0, %c0_0, %c0_1] : memref<1x8x96xbf16, #tpu.memory_space<vmem>>, vector<1x8x96xbf16>
    %1 = vector.shape_cast %0 : vector<1x8x96xbf16> to vector<8x96xbf16>
    %c0_2 = arith.constant 0 : index
    %c0_3 = arith.constant 0 : index
    %c0_4 = arith.constant 0 : index
    %2 = vector.load %arg2[%c0_2, %c0_3, %c0_4] : memref<1x1x8xf32, #tpu.memory_space<vmem>>, vector<1x1x8xf32>
    %3 = vector.shape_cast %2 : vector<1x1x8xf32> to vector<1x8xf32>
    %4 = vector.extract_strided_slice %1 {offsets = [0, 0], sizes = [8, 16], strides = [1, 1]} : vector<8x96xbf16> to vector<8x16xbf16>
    %5 = vector.extract_strided_slice %1 {offsets = [0, 32], sizes = [8, 16], strides = [1, 1]} : vector<8x96xbf16> to vector<8x16xbf16>
    %6 = vector.extract_strided_slice %1 {offsets = [0, 64], sizes = [8, 16], strides = [1, 1]} : vector<8x96xbf16> to vector<8x16xbf16>
    %cst = arith.constant dense<0.000000e+00> : vector<8x8xf32>
    %7 = tpu.matmul %4, %5, %cst {dimension_numbers = #tpu.dot_dimension_numbers<[1], [1], [0], [0], [0, 0, 1, 0], [], []>} : vector<8x16xbf16>, vector<8x16xbf16>, vector<8x8xf32> -> vector<8x8xf32>
    %cst_5 = arith.constant 2.500000e-01 : f32
    %8 = vector.broadcast %cst_5 : f32 to vector<8x8xf32>
    %9 = arith.mulf %7, %8 : vector<8x8xf32>
    %10 = vector.broadcast %3 : vector<1x8xf32> to vector<8x8xf32>
    %11 = arith.addf %9, %10 : vector<8x8xf32>
    %cst_6 = arith.constant dense<0xFF800000> : vector<8xf32>
    %12 = vector.multi_reduction <maximumf>, %11, %cst_6 [1] : vector<8x8xf32> to vector<8xf32>
    %13 = vector.shape_cast %12 : vector<8xf32> to vector<8x1xf32>
    %14 = vector.broadcast %13 : vector<8x1xf32> to vector<8x8xf32>
    %15 = arith.subf %11, %14 : vector<8x8xf32>
    %16 = math.exp %15 : vector<8x8xf32>
    %cst_7 = arith.constant dense<0.000000e+00> : vector<8xf32>
    %17 = vector.multi_reduction <add>, %16, %cst_7 [1] : vector<8x8xf32> to vector<8xf32>
    %18 = vector.shape_cast %17 : vector<8xf32> to vector<8x1xf32>
    %19 = tpu.reciprocal %18 {approx = true} : vector<8x1xf32> -> vector<8x1xf32>
    %20 = vector.broadcast %19 : vector<8x1xf32> to vector<8x8xf32>
    %21 = arith.mulf %16, %20 : vector<8x8xf32>
    %22 = arith.truncf %21 : vector<8x8xf32> to vector<8x8xbf16>
    %cst_8 = arith.constant dense<0.000000e+00> : vector<8x16xf32>
    %23 = tpu.matmul %22, %6, %cst_8 {dimension_numbers = #tpu.dot_dimension_numbers<[1], [0], [0], [1], [0, 0, 1, 1], [], []>} : vector<8x8xbf16>, vector<8x16xbf16>, vector<8x16xf32> -> vector<8x16xf32>
    %24 = vector.extract_strided_slice %1 {offsets = [0, 16], sizes = [8, 16], strides = [1, 1]} : vector<8x96xbf16> to vector<8x16xbf16>
    %25 = vector.extract_strided_slice %1 {offsets = [0, 48], sizes = [8, 16], strides = [1, 1]} : vector<8x96xbf16> to vector<8x16xbf16>
    %26 = vector.extract_strided_slice %1 {offsets = [0, 80], sizes = [8, 16], strides = [1, 1]} : vector<8x96xbf16> to vector<8x16xbf16>
    %cst_9 = arith.constant dense<0.000000e+00> : vector<8x8xf32>
    %27 = tpu.matmul %24, %25, %cst_9 {dimension_numbers = #tpu.dot_dimension_numbers<[1], [1], [0], [0], [0, 0, 1, 0], [], []>} : vector<8x16xbf16>, vector<8x16xbf16>, vector<8x8xf32> -> vector<8x8xf32>
    %cst_10 = arith.constant 2.500000e-01 : f32
    %28 = vector.broadcast %cst_10 : f32 to vector<8x8xf32>
    %29 = arith.mulf %27, %28 : vector<8x8xf32>
    %30 = vector.broadcast %3 : vector<1x8xf32> to vector<8x8xf32>
    %31 = arith.addf %29, %30 : vector<8x8xf32>
    %cst_11 = arith.constant dense<0xFF800000> : vector<8xf32>
    %32 = vector.multi_reduction <maximumf>, %31, %cst_11 [1] : vector<8x8xf32> to vector<8xf32>
    %33 = vector.shape_cast %32 : vector<8xf32> to vector<8x1xf32>
    %34 = vector.broadcast %33 : vector<8x1xf32> to vector<8x8xf32>
    %35 = arith.subf %31, %34 : vector<8x8xf32>
    %36 = math.exp %35 : vector<8x8xf32>
    %cst_12 = arith.constant dense<0.000000e+00> : vector<8xf32>
    %37 = vector.multi_reduction <add>, %36, %cst_12 [1] : vector<8x8xf32> to vector<8xf32>
    %38 = vector.shape_cast %37 : vector<8xf32> to vector<8x1xf32>
    %39 = tpu.reciprocal %38 {approx = true} : vector<8x1xf32> -> vector<8x1xf32>
    %40 = vector.broadcast %39 : vector<8x1xf32> to vector<8x8xf32>
    %41 = arith.mulf %36, %40 : vector<8x8xf32>
    %42 = arith.truncf %41 : vector<8x8xf32> to vector<8x8xbf16>
    %cst_13 = arith.constant dense<0.000000e+00> : vector<8x16xf32>
    %43 = tpu.matmul %42, %26, %cst_13 {dimension_numbers = #tpu.dot_dimension_numbers<[1], [0], [0], [1], [0, 0, 1, 1], [], []>} : vector<8x8xbf16>, vector<8x16xbf16>, vector<8x16xf32> -> vector<8x16xf32>
    %44 = tpu.concatenate %23, %43 in 1 : vector<8x16xf32>, vector<8x16xf32> -> vector<8x32xf32>
    %45 = arith.truncf %44 : vector<8x32xf32> to vector<8x32xbf16>
    %c0_14 = arith.constant 0 : index
    %c0_15 = arith.constant 0 : index
    %c0_16 = arith.constant 0 : index
    %46 = vector.load %arg3[%c0_14, %c0_15, %c0_16] : memref<1x8x32xbf16, #tpu.memory_space<vmem>>, vector<1x8x32xbf16>
    %47 = vector.shape_cast %46 : vector<1x8x32xbf16> to vector<8x32xbf16>
    %48 = vector.shape_cast %45 : vector<8x32xbf16> to vector<1x8x32xbf16>
    tpu.vector_store %arg3[%c0_14, %c0_15, %c0_16], %48 {strides = array<i32>} : memref<1x8x32xbf16, #tpu.memory_space<vmem>>, vector<1x8x32xbf16>,
    return
  }
  func.func @transform_0(%arg0: i32) -> (i32, i32, i32) {
    %c0_i32 = arith.constant 0 : i32
    %c0_i32_0 = arith.constant 0 : i32
    %c0_i32_1 = arith.constant 0 : i32
    return %arg0, %c0_i32, %c0_i32_0 : i32, i32, i32
  }
  func.func @transform_1(%arg0: i32) -> (i32, i32, i32) {
    %c0_i32 = arith.constant 0 : i32
    %c0_i32_0 = arith.constant 0 : i32
    %c0_i32_1 = arith.constant 0 : i32
    return %arg0, %c0_i32, %c0_i32_0 : i32, i32, i32
  }
  func.func @transform_2(%arg0: i32) -> (i32, i32, i32) {
    %c0_i32 = arith.constant 0 : i32
    %c0_i32_0 = arith.constant 0 : i32
    %c0_i32_1 = arith.constant 0 : i32
    return %arg0, %c0_i32, %c0_i32_0 : i32, i32, i32
  }
}

module attributes {stable_mosaic.version = 11 : i64} {
  func.func @_mm_kernel(%arg0: i32, %arg1: i32, %arg2: i32, %arg3: memref<16x32xbf16, #tpu.memory_space<vmem>>, %arg4: memref<32x64xbf16, #tpu.memory_space<vmem>>, %arg5: memref<1x64xf32, #tpu.memory_space<vmem>>, %arg6: memref<16x64xbf16, #tpu.memory_space<vmem>>, %arg7: memref<16x64xf32, #tpu.memory_space<vmem>>) attributes {dimension_semantics = [#tpu.dimension_semantics<parallel>, #tpu.dimension_semantics<parallel>, #tpu.dimension_semantics<arbitrary>], iteration_bounds = array<i64: 1, 1, 1>, scalar_prefetch = 0 : i64, scratch_operands = 1 : i64, tpu.core_type = #tpu.core_type<tc>, window_params = [{transform_indices = @transform_0, window_bounds = array<i64: 16, 32>}, {transform_indices = @transform_1, window_bounds = array<i64: 32, 64>}, {transform_indices = @transform_2, window_bounds = array<i64: 1, 64>}, {transform_indices = @transform_3, window_bounds = array<i64: 16, 64>}]} {
    %c0_i32 = arith.constant 0 : i32
    %0 = arith.cmpi eq, %arg2, %c0_i32 : i32
    %1 = arith.extui %0 : i1 to i32
    %c0_i32_0 = arith.constant 0 : i32
    %2 = arith.cmpi ne, %1, %c0_i32_0 : i32
    scf.if %2 {
      %cst_10 = arith.constant 0.000000e+00 : f32
      %12 = vector.broadcast %cst_10 : f32 to vector<16x64xf32>
      %c0_11 = arith.constant 0 : index
      %c0_12 = arith.constant 0 : index
      %13 = vector.load %arg7[%c0_11, %c0_12] : memref<16x64xf32, #tpu.memory_space<vmem>>, vector<16x64xf32>
      tpu.vector_store %arg7[%c0_11, %c0_12], %12 {strides = array<i32>} : memref<16x64xf32, #tpu.memory_space<vmem>>, vector<16x64xf32>,
    } else {
    }
    %c0 = arith.constant 0 : index
    %c0_1 = arith.constant 0 : index
    %3 = vector.load %arg7[%c0, %c0_1] : memref<16x64xf32, #tpu.memory_space<vmem>>, vector<16x64xf32>
    %c0_2 = arith.constant 0 : index
    %c0_3 = arith.constant 0 : index
    %4 = vector.load %arg3[%c0_2, %c0_3] : memref<16x32xbf16, #tpu.memory_space<vmem>>, vector<16x32xbf16>
    %c0_4 = arith.constant 0 : index
    %c0_5 = arith.constant 0 : index
    %5 = vector.load %arg4[%c0_4, %c0_5] : memref<32x64xbf16, #tpu.memory_space<vmem>>, vector<32x64xbf16>
    %cst = arith.constant dense<0.000000e+00> : vector<16x64xf32>
    %6 = tpu.matmul %4, %5, %cst {dimension_numbers = #tpu.dot_dimension_numbers<[1], [0], [0], [1], [0, 0, 1, 1], [], []>} : vector<16x32xbf16>, vector<32x64xbf16>, vector<16x64xf32> -> vector<16x64xf32>
    %7 = arith.addf %3, %6 : vector<16x64xf32>
    %c0_6 = arith.constant 0 : index
    %c0_7 = arith.constant 0 : index
    %8 = vector.load %arg7[%c0_6, %c0_7] : memref<16x64xf32, #tpu.memory_space<vmem>>, vector<16x64xf32>
    tpu.vector_store %arg7[%c0_6, %c0_7], %7 {strides = array<i32>} : memref<16x64xf32, #tpu.memory_space<vmem>>, vector<16x64xf32>,
    %c0_i32_8 = arith.constant 0 : i32
    %9 = arith.cmpi eq, %arg2, %c0_i32_8 : i32
    %10 = arith.extui %9 : i1 to i32
    %c0_i32_9 = arith.constant 0 : i32
    %11 = arith.cmpi ne, %10, %c0_i32_9 : i32
    scf.if %11 {
      %c0_10 = arith.constant 0 : index
      %c0_11 = arith.constant 0 : index
      %12 = vector.load %arg7[%c0_10, %c0_11] : memref<16x64xf32, #tpu.memory_space<vmem>>, vector<16x64xf32>
      %c0_12 = arith.constant 0 : index
      %c0_13 = arith.constant 0 : index
      %13 = vector.load %arg5[%c0_12, %c0_13] : memref<1x64xf32, #tpu.memory_space<vmem>>, vector<1x64xf32>
      %14 = vector.broadcast %13 : vector<1x64xf32> to vector<16x64xf32>
      %15 = arith.addf %12, %14 : vector<16x64xf32>
      %cst_14 = arith.constant 5.000000e-01 : f32
      %16 = vector.broadcast %cst_14 : f32 to vector<16x64xf32>
      %17 = arith.mulf %16, %15 : vector<16x64xf32>
      %cst_15 = arith.constant 0.707106769 : f32
      %18 = vector.broadcast %cst_15 : f32 to vector<16x64xf32>
      %19 = arith.mulf %15, %18 : vector<16x64xf32>
      %20 = math.absf %19 : vector<16x64xf32>
      %cst_16 = arith.constant 0.327591091 : f32
      %21 = vector.broadcast %cst_16 : f32 to vector<16x64xf32>
      %22 = arith.mulf %21, %20 : vector<16x64xf32>
      %cst_17 = arith.constant 1.000000e+00 : f32
      %23 = vector.broadcast %cst_17 : f32 to vector<16x64xf32>
      %24 = arith.addf %23, %22 : vector<16x64xf32>
      %cst_18 = arith.constant 1.000000e+00 : f32
      %25 = vector.broadcast %cst_18 : f32 to vector<16x64xf32>
      %26 = arith.divf %25, %24 : vector<16x64xf32>
      %cst_19 = arith.constant 1.06140542 : f32
      %27 = vector.broadcast %cst_19 : f32 to vector<16x64xf32>
      %28 = arith.mulf %27, %26 : vector<16x64xf32>
      %cst_20 = arith.constant -1.45315206 : f32
      %29 = vector.broadcast %cst_20 : f32 to vector<16x64xf32>
      %30 = arith.addf %28, %29 : vector<16x64xf32>
      %31 = arith.mulf %30, %26 : vector<16x64xf32>
      %cst_21 = arith.constant 1.42141378 : f32
      %32 = vector.broadcast %cst_21 : f32 to vector<16x64xf32>
      %33 = arith.addf %31, %32 : vector<16x64xf32>
      %34 = arith.mulf %33, %26 : vector<16x64xf32>
      %cst_22 = arith.constant -0.284496725 : f32
      %35 = vector.broadcast %cst_22 : f32 to vector<16x64xf32>
      %36 = arith.addf %34, %35 : vector<16x64xf32>
      %37 = arith.mulf %36, %26 : vector<16x64xf32>
      %cst_23 = arith.constant 0.254829586 : f32
      %38 = vector.broadcast %cst_23 : f32 to vector<16x64xf32>
      %39 = arith.addf %37, %38 : vector<16x64xf32>
      %40 = arith.mulf %39, %26 : vector<16x64xf32>
      %cst_24 = arith.constant 0.000000e+00 : f32
      %41 = vector.broadcast %cst_24 : f32 to vector<16x64xf32>
      %42 = arith.subf %41, %20 : vector<16x64xf32>
      %43 = arith.mulf %42, %20 : vector<16x64xf32>
      %44 = math.exp %43 : vector<16x64xf32>
      %45 = arith.mulf %40, %44 : vector<16x64xf32>
      %cst_25 = arith.constant 1.000000e+00 : f32
      %46 = vector.broadcast %cst_25 : f32 to vector<16x64xf32>
      %47 = arith.subf %46, %45 : vector<16x64xf32>
      %cst_26 = arith.constant 0.000000e+00 : f32
      %48 = vector.broadcast %cst_26 : f32 to vector<16x64xf32>
      %49 = arith.cmpf oge, %19, %48 : vector<16x64xf32>
      %cst_27 = arith.constant 0.000000e+00 : f32
      %50 = vector.broadcast %cst_27 : f32 to vector<16x64xf32>
      %51 = arith.subf %50, %47 : vector<16x64xf32>
      %52 = arith.select %49, %47, %51 : vector<16x64xi1>, vector<16x64xf32>
      %cst_28 = arith.constant 1.000000e+00 : f32
      %53 = vector.broadcast %cst_28 : f32 to vector<16x64xf32>
      %54 = arith.addf %53, %52 : vector<16x64xf32>
      %55 = arith.mulf %17, %54 : vector<16x64xf32>
      %56 = arith.truncf %55 : vector<16x64xf32> to vector<16x64xbf16>
      %c0_29 = arith.constant 0 : index
      %c0_30 = arith.constant 0 : index
      %57 = vector.load %arg6[%c0_29, %c0_30] : memref<16x64xbf16, #tpu.memory_space<vmem>>, vector<16x64xbf16>
      tpu.vector_store %arg6[%c0_29, %c0_30], %56 {strides = array<i32>} : memref<16x64xbf16, #tpu.memory_space<vmem>>, vector<16x64xbf16>,
    } else {
    }
    return
  }
  func.func @transform_0(%arg0: i32, %arg1: i32, %arg2: i32) -> (i32, i32) {
    %c0_i32 = arith.constant 0 : i32
    return %arg0, %arg2 : i32, i32
  }
  func.func @transform_1(%arg0: i32, %arg1: i32, %arg2: i32) -> (i32, i32) {
    %c0_i32 = arith.constant 0 : i32
    return %arg2, %arg1 : i32, i32
  }
  func.func @transform_2(%arg0: i32, %arg1: i32, %arg2: i32) -> (i32, i32) {
    %c0_i32 = arith.constant 0 : i32
    %c0_i32_0 = arith.constant 0 : i32
    return %c0_i32, %arg1 : i32, i32
  }
  func.func @transform_3(%arg0: i32, %arg1: i32, %arg2: i32) -> (i32, i32) {
    %c0_i32 = arith.constant 0 : i32
    return %arg0, %arg1 : i32, i32
  }
}

module attributes {stable_mosaic.version = 11 : i64} {
  func.func @_mm_ln_kernel(%arg0: i32, %arg1: i32, %arg2: memref<16x64xbf16, #tpu.memory_space<vmem>>, %arg3: memref<64x32xbf16, #tpu.memory_space<vmem>>, %arg4: memref<1x32xf32, #tpu.memory_space<vmem>>, %arg5: memref<16x32xf32, #tpu.memory_space<vmem>>, %arg6: memref<1x32xf32, #tpu.memory_space<vmem>>, %arg7: memref<1x32xf32, #tpu.memory_space<vmem>>, %arg8: memref<16x32xf32, #tpu.memory_space<vmem>>, %arg9: memref<16x32xf32, #tpu.memory_space<vmem>>) attributes {dimension_semantics = [#tpu.dimension_semantics<parallel>, #tpu.dimension_semantics<arbitrary>], iteration_bounds = array<i64: 1, 1>, scalar_prefetch = 0 : i64, scratch_operands = 1 : i64, tpu.core_type = #tpu.core_type<tc>, window_params = [{transform_indices = @transform_0, window_bounds = array<i64: 16, 64>}, {transform_indices = @transform_1, window_bounds = array<i64: 64, 32>}, {pipeline_mode = #tpu.pipeline_mode<synchronous>, transform_indices = @transform_2, window_bounds = array<i64: 1, 32>}, {transform_indices = @transform_3, window_bounds = array<i64: 16, 32>}, {pipeline_mode = #tpu.pipeline_mode<synchronous>, transform_indices = @transform_4, window_bounds = array<i64: 1, 32>}, {pipeline_mode = #tpu.pipeline_mode<synchronous>, transform_indices = @transform_5, window_bounds = array<i64: 1, 32>}, {transform_indices = @transform_6, window_bounds = array<i64: 16, 32>}]} {
    %c0_i32 = arith.constant 0 : i32
    %0 = arith.cmpi eq, %arg1, %c0_i32 : i32
    %1 = arith.extui %0 : i1 to i32
    %c0_i32_0 = arith.constant 0 : i32
    %2 = arith.cmpi ne, %1, %c0_i32_0 : i32
    scf.if %2 {
      %cst_10 = arith.constant 0.000000e+00 : f32
      %12 = vector.broadcast %cst_10 : f32 to vector<16x32xf32>
      %c0_11 = arith.constant 0 : index
      %c0_12 = arith.constant 0 : index
      %13 = vector.load %arg9[%c0_11, %c0_12] : memref<16x32xf32, #tpu.memory_space<vmem>>, vector<16x32xf32>
      tpu.vector_store %arg9[%c0_11, %c0_12], %12 {strides = array<i32>} : memref<16x32xf32, #tpu.memory_space<vmem>>, vector<16x32xf32>,
    } else {
    }
    %c0 = arith.constant 0 : index
    %c0_1 = arith.constant 0 : index
    %3 = vector.load %arg9[%c0, %c0_1] : memref<16x32xf32, #tpu.memory_space<vmem>>, vector<16x32xf32>
    %c0_2 = arith.constant 0 : index
    %c0_3 = arith.constant 0 : index
    %4 = vector.load %arg2[%c0_2, %c0_3] : memref<16x64xbf16, #tpu.memory_space<vmem>>, vector<16x64xbf16>
    %c0_4 = arith.constant 0 : index
    %c0_5 = arith.constant 0 : index
    %5 = vector.load %arg3[%c0_4, %c0_5] : memref<64x32xbf16, #tpu.memory_space<vmem>>, vector<64x32xbf16>
    %cst = arith.constant dense<0.000000e+00> : vector<16x32xf32>
    %6 = tpu.matmul %4, %5, %cst {dimension_numbers = #tpu.dot_dimension_numbers<[1], [0], [0], [1], [0, 0, 1, 1], [], []>} : vector<16x64xbf16>, vector<64x32xbf16>, vector<16x32xf32> -> vector<16x32xf32>
    %7 = arith.addf %3, %6 : vector<16x32xf32>
    %c0_6 = arith.constant 0 : index
    %c0_7 = arith.constant 0 : index
    %8 = vector.load %arg9[%c0_6, %c0_7] : memref<16x32xf32, #tpu.memory_space<vmem>>, vector<16x32xf32>
    tpu.vector_store %arg9[%c0_6, %c0_7], %7 {strides = array<i32>} : memref<16x32xf32, #tpu.memory_space<vmem>>, vector<16x32xf32>,
    %c0_i32_8 = arith.constant 0 : i32
    %9 = arith.cmpi eq, %arg1, %c0_i32_8 : i32
    %10 = arith.extui %9 : i1 to i32
    %c0_i32_9 = arith.constant 0 : i32
    %11 = arith.cmpi ne, %10, %c0_i32_9 : i32
    scf.if %11 {
      %c0_10 = arith.constant 0 : index
      %c0_11 = arith.constant 0 : index
      %12 = vector.load %arg9[%c0_10, %c0_11] : memref<16x32xf32, #tpu.memory_space<vmem>>, vector<16x32xf32>
      %c0_12 = arith.constant 0 : index
      %c0_13 = arith.constant 0 : index
      %13 = vector.load %arg4[%c0_12, %c0_13] : memref<1x32xf32, #tpu.memory_space<vmem>>, vector<1x32xf32>
      %14 = vector.broadcast %13 : vector<1x32xf32> to vector<16x32xf32>
      %15 = arith.addf %12, %14 : vector<16x32xf32>
      %c0_14 = arith.constant 0 : index
      %c0_15 = arith.constant 0 : index
      %16 = vector.load %arg5[%c0_14, %c0_15] : memref<16x32xf32, #tpu.memory_space<vmem>>, vector<16x32xf32>
      %17 = arith.addf %15, %16 : vector<16x32xf32>
      %c0_16 = arith.constant 0 : index
      %c0_17 = arith.constant 0 : index
      %18 = vector.load %arg6[%c0_16, %c0_17] : memref<1x32xf32, #tpu.memory_space<vmem>>, vector<1x32xf32>
      %c0_18 = arith.constant 0 : index
      %c0_19 = arith.constant 0 : index
      %19 = vector.load %arg7[%c0_18, %c0_19] : memref<1x32xf32, #tpu.memory_space<vmem>>, vector<1x32xf32>
      %cst_20 = arith.constant dense<0.000000e+00> : vector<16xf32>
      %20 = vector.multi_reduction <add>, %17, %cst_20 [1] : vector<16x32xf32> to vector<16xf32>
      %21 = vector.shape_cast %20 : vector<16xf32> to vector<16x1xf32>
      %cst_21 = arith.constant 3.200000e+01 : f32
      %22 = vector.broadcast %cst_21 : f32 to vector<16x1xf32>
      %23 = arith.divf %21, %22 : vector<16x1xf32>
      %24 = vector.broadcast %23 : vector<16x1xf32> to vector<16x32xf32>
      %25 = arith.subf %17, %24 : vector<16x32xf32>
      %26 = arith.mulf %25, %25 : vector<16x32xf32>
      %cst_22 = arith.constant dense<0.000000e+00> : vector<16xf32>
      %27 = vector.multi_reduction <add>, %26, %cst_22 [1] : vector<16x32xf32> to vector<16xf32>
      %28 = vector.shape_cast %27 : vector<16xf32> to vector<16x1xf32>
      %cst_23 = arith.constant 3.200000e+01 : f32
      %29 = vector.broadcast %cst_23 : f32 to vector<16x1xf32>
      %30 = arith.divf %28, %29 : vector<16x1xf32>
      %cst_24 = arith.constant 9.99999996E-13 : f32
      %31 = vector.broadcast %cst_24 : f32 to vector<16x1xf32>
      %32 = arith.addf %30, %31 : vector<16x1xf32>
      %33 = math.rsqrt %32 : vector<16x1xf32>
      %34 = vector.broadcast %33 : vector<16x1xf32> to vector<16x32xf32>
      %35 = arith.mulf %25, %34 : vector<16x32xf32>
      %36 = vector.broadcast %18 : vector<1x32xf32> to vector<16x32xf32>
      %37 = arith.mulf %35, %36 : vector<16x32xf32>
      %38 = vector.broadcast %19 : vector<1x32xf32> to vector<16x32xf32>
      %39 = arith.addf %37, %38 : vector<16x32xf32>
      %c0_25 = arith.constant 0 : index
      %c0_26 = arith.constant 0 : index
      %40 = vector.load %arg8[%c0_25, %c0_26] : memref<16x32xf32, #tpu.memory_space<vmem>>, vector<16x32xf32>
      tpu.vector_store %arg8[%c0_25, %c0_26], %39 {strides = array<i32>} : memref<16x32xf32, #tpu.memory_space<vmem>>, vector<16x32xf32>,
    } else {
    }
    return
  }
  func.func @transform_0(%arg0: i32, %arg1: i32) -> (i32, i32) {
    %c0_i32 = arith.constant 0 : i32
    return %arg0, %arg1 : i32, i32
  }
  func.func @transform_1(%arg0: i32, %arg1: i32) -> (i32, i32) {
    %c0_i32 = arith.constant 0 : i32
    %c0_i32_0 = arith.constant 0 : i32
    return %arg1, %c0_i32 : i32, i32
  }
  func.func @transform_2(%arg0: i32, %arg1: i32) -> (i32, i32) {
    %c0_i32 = arith.constant 0 : i32
    %c0_i32_0 = arith.constant 0 : i32
    %c0_i32_1 = arith.constant 0 : i32
    return %c0_i32, %c0_i32_0 : i32, i32
  }
  func.func @transform_3(%arg0: i32, %arg1: i32) -> (i32, i32) {
    %c0_i32 = arith.constant 0 : i32
    %c0_i32_0 = arith.constant 0 : i32
    return %arg0, %c0_i32 : i32, i32
  }
  func.func @transform_4(%arg0: i32, %arg1: i32) -> (i32, i32) {
    %c0_i32 = arith.constant 0 : i32
    %c0_i32_0 = arith.constant 0 : i32
    %c0_i32_1 = arith.constant 0 : i32
    return %c0_i32, %c0_i32_0 : i32, i32
  }
  func.func @transform_5(%arg0: i32, %arg1: i32) -> (i32, i32) {
    %c0_i32 = arith.constant 0 : i32
    %c0_i32_0 = arith.constant 0 : i32
    %c0_i32_1 = arith.constant 0 : i32
    return %c0_i32, %c0_i32_0 : i32, i32
  }
  func.func @transform_6(%arg0: i32, %arg1: i32) -> (i32, i32) {
    %c0_i32 = arith.constant 0 : i32
    %c0_i32_0 = arith.constant 0 : i32
    return %arg0, %c0_i32 : i32, i32
  }
}

module attributes {stable_mosaic.version = 11 : i64} {
  func.func @_mm_ln_kernel(%arg0: i32, %arg1: i32, %arg2: memref<16x32xbf16, #tpu.memory_space<vmem>>, %arg3: memref<32x32xbf16, #tpu.memory_space<vmem>>, %arg4: memref<1x32xf32, #tpu.memory_space<vmem>>, %arg5: memref<1x32xf32, #tpu.memory_space<vmem>>, %arg6: memref<1x32xf32, #tpu.memory_space<vmem>>, %arg7: memref<16x32xf32, #tpu.memory_space<vmem>>, %arg8: memref<16x32xf32, #tpu.memory_space<vmem>>) attributes {dimension_semantics = [#tpu.dimension_semantics<parallel>, #tpu.dimension_semantics<arbitrary>], iteration_bounds = array<i64: 1, 1>, scalar_prefetch = 0 : i64, scratch_operands = 1 : i64, tpu.core_type = #tpu.core_type<tc>, window_params = [{transform_indices = @transform_0, window_bounds = array<i64: 16, 32>}, {transform_indices = @transform_1, window_bounds = array<i64: 32, 32>}, {pipeline_mode = #tpu.pipeline_mode<synchronous>, transform_indices = @transform_2, window_bounds = array<i64: 1, 32>}, {pipeline_mode = #tpu.pipeline_mode<synchronous>, transform_indices = @transform_3, window_bounds = array<i64: 1, 32>}, {pipeline_mode = #tpu.pipeline_mode<synchronous>, transform_indices = @transform_4, window_bounds = array<i64: 1, 32>}, {transform_indices = @transform_5, window_bounds = array<i64: 16, 32>}]} {
    %c0_i32 = arith.constant 0 : i32
    %0 = arith.cmpi eq, %arg1, %c0_i32 : i32
    %1 = arith.extui %0 : i1 to i32
    %c0_i32_0 = arith.constant 0 : i32
    %2 = arith.cmpi ne, %1, %c0_i32_0 : i32
    scf.if %2 {
      %cst_10 = arith.constant 0.000000e+00 : f32
      %12 = vector.broadcast %cst_10 : f32 to vector<16x32xf32>
      %c0_11 = arith.constant 0 : index
      %c0_12 = arith.constant 0 : index
      %13 = vector.load %arg8[%c0_11, %c0_12] : memref<16x32xf32, #tpu.memory_space<vmem>>, vector<16x32xf32>
      tpu.vector_store %arg8[%c0_11, %c0_12], %12 {strides = array<i32>} : memref<16x32xf32, #tpu.memory_space<vmem>>, vector<16x32xf32>,
    } else {
    }
    %c0 = arith.constant 0 : index
    %c0_1 = arith.constant 0 : index
    %3 = vector.load %arg8[%c0, %c0_1] : memref<16x32xf32, #tpu.memory_space<vmem>>, vector<16x32xf32>
    %c0_2 = arith.constant 0 : index
    %c0_3 = arith.constant 0 : index
    %4 = vector.load %arg2[%c0_2, %c0_3] : memref<16x32xbf16, #tpu.memory_space<vmem>>, vector<16x32xbf16>
    %c0_4 = arith.constant 0 : index
    %c0_5 = arith.constant 0 : index
    %5 = vector.load %arg3[%c0_4, %c0_5] : memref<32x32xbf16, #tpu.memory_space<vmem>>, vector<32x32xbf16>
    %cst = arith.constant dense<0.000000e+00> : vector<16x32xf32>
    %6 = tpu.matmul %4, %5, %cst {dimension_numbers = #tpu.dot_dimension_numbers<[1], [0], [0], [1], [0, 0, 1, 1], [], []>} : vector<16x32xbf16>, vector<32x32xbf16>, vector<16x32xf32> -> vector<16x32xf32>
    %7 = arith.addf %3, %6 : vector<16x32xf32>
    %c0_6 = arith.constant 0 : index
    %c0_7 = arith.constant 0 : index
    %8 = vector.load %arg8[%c0_6, %c0_7] : memref<16x32xf32, #tpu.memory_space<vmem>>, vector<16x32xf32>
    tpu.vector_store %arg8[%c0_6, %c0_7], %7 {strides = array<i32>} : memref<16x32xf32, #tpu.memory_space<vmem>>, vector<16x32xf32>,
    %c0_i32_8 = arith.constant 0 : i32
    %9 = arith.cmpi eq, %arg1, %c0_i32_8 : i32
    %10 = arith.extui %9 : i1 to i32
    %c0_i32_9 = arith.constant 0 : i32
    %11 = arith.cmpi ne, %10, %c0_i32_9 : i32
    scf.if %11 {
      %c0_10 = arith.constant 0 : index
      %c0_11 = arith.constant 0 : index
      %12 = vector.load %arg8[%c0_10, %c0_11] : memref<16x32xf32, #tpu.memory_space<vmem>>, vector<16x32xf32>
      %c0_12 = arith.constant 0 : index
      %c0_13 = arith.constant 0 : index
      %13 = vector.load %arg4[%c0_12, %c0_13] : memref<1x32xf32, #tpu.memory_space<vmem>>, vector<1x32xf32>
      %14 = vector.broadcast %13 : vector<1x32xf32> to vector<16x32xf32>
      %15 = arith.addf %12, %14 : vector<16x32xf32>
      %cst_14 = arith.constant 5.000000e-01 : f32
      %16 = vector.broadcast %cst_14 : f32 to vector<16x32xf32>
      %17 = arith.mulf %16, %15 : vector<16x32xf32>
      %cst_15 = arith.constant 0.707106769 : f32
      %18 = vector.broadcast %cst_15 : f32 to vector<16x32xf32>
      %19 = arith.mulf %15, %18 : vector<16x32xf32>
      %20 = math.absf %19 : vector<16x32xf32>
      %cst_16 = arith.constant 0.327591091 : f32
      %21 = vector.broadcast %cst_16 : f32 to vector<16x32xf32>
      %22 = arith.mulf %21, %20 : vector<16x32xf32>
      %cst_17 = arith.constant 1.000000e+00 : f32
      %23 = vector.broadcast %cst_17 : f32 to vector<16x32xf32>
      %24 = arith.addf %23, %22 : vector<16x32xf32>
      %cst_18 = arith.constant 1.000000e+00 : f32
      %25 = vector.broadcast %cst_18 : f32 to vector<16x32xf32>
      %26 = arith.divf %25, %24 : vector<16x32xf32>
      %cst_19 = arith.constant 1.06140542 : f32
      %27 = vector.broadcast %cst_19 : f32 to vector<16x32xf32>
      %28 = arith.mulf %27, %26 : vector<16x32xf32>
      %cst_20 = arith.constant -1.45315206 : f32
      %29 = vector.broadcast %cst_20 : f32 to vector<16x32xf32>
      %30 = arith.addf %28, %29 : vector<16x32xf32>
      %31 = arith.mulf %30, %26 : vector<16x32xf32>
      %cst_21 = arith.constant 1.42141378 : f32
      %32 = vector.broadcast %cst_21 : f32 to vector<16x32xf32>
      %33 = arith.addf %31, %32 : vector<16x32xf32>
      %34 = arith.mulf %33, %26 : vector<16x32xf32>
      %cst_22 = arith.constant -0.284496725 : f32
      %35 = vector.broadcast %cst_22 : f32 to vector<16x32xf32>
      %36 = arith.addf %34, %35 : vector<16x32xf32>
      %37 = arith.mulf %36, %26 : vector<16x32xf32>
      %cst_23 = arith.constant 0.254829586 : f32
      %38 = vector.broadcast %cst_23 : f32 to vector<16x32xf32>
      %39 = arith.addf %37, %38 : vector<16x32xf32>
      %40 = arith.mulf %39, %26 : vector<16x32xf32>
      %cst_24 = arith.constant 0.000000e+00 : f32
      %41 = vector.broadcast %cst_24 : f32 to vector<16x32xf32>
      %42 = arith.subf %41, %20 : vector<16x32xf32>
      %43 = arith.mulf %42, %20 : vector<16x32xf32>
      %44 = math.exp %43 : vector<16x32xf32>
      %45 = arith.mulf %40, %44 : vector<16x32xf32>
      %cst_25 = arith.constant 1.000000e+00 : f32
      %46 = vector.broadcast %cst_25 : f32 to vector<16x32xf32>
      %47 = arith.subf %46, %45 : vector<16x32xf32>
      %cst_26 = arith.constant 0.000000e+00 : f32
      %48 = vector.broadcast %cst_26 : f32 to vector<16x32xf32>
      %49 = arith.cmpf oge, %19, %48 : vector<16x32xf32>
      %cst_27 = arith.constant 0.000000e+00 : f32
      %50 = vector.broadcast %cst_27 : f32 to vector<16x32xf32>
      %51 = arith.subf %50, %47 : vector<16x32xf32>
      %52 = arith.select %49, %47, %51 : vector<16x32xi1>, vector<16x32xf32>
      %cst_28 = arith.constant 1.000000e+00 : f32
      %53 = vector.broadcast %cst_28 : f32 to vector<16x32xf32>
      %54 = arith.addf %53, %52 : vector<16x32xf32>
      %55 = arith.mulf %17, %54 : vector<16x32xf32>
      %c0_29 = arith.constant 0 : index
      %c0_30 = arith.constant 0 : index
      %56 = vector.load %arg5[%c0_29, %c0_30] : memref<1x32xf32, #tpu.memory_space<vmem>>, vector<1x32xf32>
      %c0_31 = arith.constant 0 : index
      %c0_32 = arith.constant 0 : index
      %57 = vector.load %arg6[%c0_31, %c0_32] : memref<1x32xf32, #tpu.memory_space<vmem>>, vector<1x32xf32>
      %cst_33 = arith.constant dense<0.000000e+00> : vector<16xf32>
      %58 = vector.multi_reduction <add>, %55, %cst_33 [1] : vector<16x32xf32> to vector<16xf32>
      %59 = vector.shape_cast %58 : vector<16xf32> to vector<16x1xf32>
      %cst_34 = arith.constant 3.200000e+01 : f32
      %60 = vector.broadcast %cst_34 : f32 to vector<16x1xf32>
      %61 = arith.divf %59, %60 : vector<16x1xf32>
      %62 = vector.broadcast %61 : vector<16x1xf32> to vector<16x32xf32>
      %63 = arith.subf %55, %62 : vector<16x32xf32>
      %64 = arith.mulf %63, %63 : vector<16x32xf32>
      %cst_35 = arith.constant dense<0.000000e+00> : vector<16xf32>
      %65 = vector.multi_reduction <add>, %64, %cst_35 [1] : vector<16x32xf32> to vector<16xf32>
      %66 = vector.shape_cast %65 : vector<16xf32> to vector<16x1xf32>
      %cst_36 = arith.constant 3.200000e+01 : f32
      %67 = vector.broadcast %cst_36 : f32 to vector<16x1xf32>
      %68 = arith.divf %66, %67 : vector<16x1xf32>
      %cst_37 = arith.constant 9.99999996E-13 : f32
      %69 = vector.broadcast %cst_37 : f32 to vector<16x1xf32>
      %70 = arith.addf %68, %69 : vector<16x1xf32>
      %71 = math.rsqrt %70 : vector<16x1xf32>
      %72 = vector.broadcast %71 : vector<16x1xf32> to vector<16x32xf32>
      %73 = arith.mulf %63, %72 : vector<16x32xf32>
      %74 = vector.broadcast %56 : vector<1x32xf32> to vector<16x32xf32>
      %75 = arith.mulf %73, %74 : vector<16x32xf32>
      %76 = vector.broadcast %57 : vector<1x32xf32> to vector<16x32xf32>
      %77 = arith.addf %75, %76 : vector<16x32xf32>
      %c0_38 = arith.constant 0 : index
      %c0_39 = arith.constant 0 : index
      %78 = vector.load %arg7[%c0_38, %c0_39] : memref<16x32xf32, #tpu.memory_space<vmem>>, vector<16x32xf32>
      tpu.vector_store %arg7[%c0_38, %c0_39], %77 {strides = array<i32>} : memref<16x32xf32, #tpu.memory_space<vmem>>, vector<16x32xf32>,
    } else {
    }
    return
  }
  func.func @transform_0(%arg0: i32, %arg1: i32) -> (i32, i32) {
    %c0_i32 = arith.constant 0 : i32
    return %arg0, %arg1 : i32, i32
  }
  func.func @transform_1(%arg0: i32, %arg1: i32) -> (i32, i32) {
    %c0_i32 = arith.constant 0 : i32
    %c0_i32_0 = arith.constant 0 : i32
    return %arg1, %c0_i32 : i32, i32
  }
  func.func @transform_2(%arg0: i32, %arg1: i32) -> (i32, i32) {
    %c0_i32 = arith.constant 0 : i32
    %c0_i32_0 = arith.constant 0 : i32
    %c0_i32_1 = arith.constant 0 : i32
    return %c0_i32, %c0_i32_0 : i32, i32
  }
  func.func @transform_3(%arg0: i32, %arg1: i32) -> (i32, i32) {
    %c0_i32 = arith.constant 0 : i32
    %c0_i32_0 = arith.constant 0 : i32
    %c0_i32_1 = arith.constant 0 : i32
    return %c0_i32, %c0_i32_0 : i32, i32
  }
  func.func @transform_4(%arg0: i32, %arg1: i32) -> (i32, i32) {
    %c0_i32 = arith.constant 0 : i32
    %c0_i32_0 = arith.constant 0 : i32
    %c0_i32_1 = arith.constant 0 : i32
    return %c0_i32, %c0_i32_0 : i32, i32
  }
  func.func @transform_5(%arg0: i32, %arg1: i32) -> (i32, i32) {
    %c0_i32 = arith.constant 0 : i32
    %c0_i32_0 = arith.constant 0 : i32
    return %arg0, %c0_i32 : i32, i32
  }
}

module attributes {stable_mosaic.version = 11 : i64} {
  func.func @_mm_kernel(%arg0: i32, %arg1: i32, %arg2: i32, %arg3: memref<16x32xbf16, #tpu.memory_space<vmem>>, %arg4: memref<32x128xbf16, #tpu.memory_space<vmem>>, %arg5: memref<1x128xf32, #tpu.memory_space<vmem>>, %arg6: memref<16x128xf32, #tpu.memory_space<vmem>>, %arg7: memref<16x128xf32, #tpu.memory_space<vmem>>) attributes {dimension_semantics = [#tpu.dimension_semantics<parallel>, #tpu.dimension_semantics<parallel>, #tpu.dimension_semantics<arbitrary>], iteration_bounds = array<i64: 1, 1, 1>, scalar_prefetch = 0 : i64, scratch_operands = 1 : i64, tpu.core_type = #tpu.core_type<tc>, window_params = [{transform_indices = @transform_0, window_bounds = array<i64: 16, 32>}, {transform_indices = @transform_1, window_bounds = array<i64: 32, 128>}, {transform_indices = @transform_2, window_bounds = array<i64: 1, 128>}, {transform_indices = @transform_3, window_bounds = array<i64: 16, 128>}]} {
    %c0_i32 = arith.constant 0 : i32
    %0 = arith.cmpi eq, %arg2, %c0_i32 : i32
    %1 = arith.extui %0 : i1 to i32
    %c0_i32_0 = arith.constant 0 : i32
    %2 = arith.cmpi ne, %1, %c0_i32_0 : i32
    scf.if %2 {
      %cst_10 = arith.constant 0.000000e+00 : f32
      %12 = vector.broadcast %cst_10 : f32 to vector<16x128xf32>
      %c0_11 = arith.constant 0 : index
      %c0_12 = arith.constant 0 : index
      %13 = vector.load %arg7[%c0_11, %c0_12] : memref<16x128xf32, #tpu.memory_space<vmem>>, vector<16x128xf32>
      tpu.vector_store %arg7[%c0_11, %c0_12], %12 {strides = array<i32>} : memref<16x128xf32, #tpu.memory_space<vmem>>, vector<16x128xf32>,
    } else {
    }
    %c0 = arith.constant 0 : index
    %c0_1 = arith.constant 0 : index
    %3 = vector.load %arg7[%c0, %c0_1] : memref<16x128xf32, #tpu.memory_space<vmem>>, vector<16x128xf32>
    %c0_2 = arith.constant 0 : index
    %c0_3 = arith.constant 0 : index
    %4 = vector.load %arg3[%c0_2, %c0_3] : memref<16x32xbf16, #tpu.memory_space<vmem>>, vector<16x32xbf16>
    %c0_4 = arith.constant 0 : index
    %c0_5 = arith.constant 0 : index
    %5 = vector.load %arg4[%c0_4, %c0_5] : memref<32x128xbf16, #tpu.memory_space<vmem>>, vector<32x128xbf16>
    %cst = arith.constant dense<0.000000e+00> : vector<16x128xf32>
    %6 = tpu.matmul %4, %5, %cst {dimension_numbers = #tpu.dot_dimension_numbers<[1], [0], [0], [1], [0, 0, 1, 1], [], []>} : vector<16x32xbf16>, vector<32x128xbf16>, vector<16x128xf32> -> vector<16x128xf32>
    %7 = arith.addf %3, %6 : vector<16x128xf32>
    %c0_6 = arith.constant 0 : index
    %c0_7 = arith.constant 0 : index
    %8 = vector.load %arg7[%c0_6, %c0_7] : memref<16x128xf32, #tpu.memory_space<vmem>>, vector<16x128xf32>
    tpu.vector_store %arg7[%c0_6, %c0_7], %7 {strides = array<i32>} : memref<16x128xf32, #tpu.memory_space<vmem>>, vector<16x128xf32>,
    %c0_i32_8 = arith.constant 0 : i32
    %9 = arith.cmpi eq, %arg2, %c0_i32_8 : i32
    %10 = arith.extui %9 : i1 to i32
    %c0_i32_9 = arith.constant 0 : i32
    %11 = arith.cmpi ne, %10, %c0_i32_9 : i32
    scf.if %11 {
      %c0_10 = arith.constant 0 : index
      %c0_11 = arith.constant 0 : index
      %12 = vector.load %arg7[%c0_10, %c0_11] : memref<16x128xf32, #tpu.memory_space<vmem>>, vector<16x128xf32>
      %c0_12 = arith.constant 0 : index
      %c0_13 = arith.constant 0 : index
      %13 = vector.load %arg5[%c0_12, %c0_13] : memref<1x128xf32, #tpu.memory_space<vmem>>, vector<1x128xf32>
      %14 = vector.broadcast %13 : vector<1x128xf32> to vector<16x128xf32>
      %15 = arith.addf %12, %14 : vector<16x128xf32>
      %c0_14 = arith.constant 0 : index
      %c0_15 = arith.constant 0 : index
      %16 = vector.load %arg6[%c0_14, %c0_15] : memref<16x128xf32, #tpu.memory_space<vmem>>, vector<16x128xf32>
      tpu.vector_store %arg6[%c0_14, %c0_15], %15 {strides = array<i32>} : memref<16x128xf32, #tpu.memory_space<vmem>>, vector<16x128xf32>,
    } else {
    }
    return
  }
  func.func @transform_0(%arg0: i32, %arg1: i32, %arg2: i32) -> (i32, i32) {
    %c0_i32 = arith.constant 0 : i32
    return %arg0, %arg2 : i32, i32
  }
  func.func @transform_1(%arg0: i32, %arg1: i32, %arg2: i32) -> (i32, i32) {
    %c0_i32 = arith.constant 0 : i32
    return %arg2, %arg1 : i32, i32
  }
  func.func @transform_2(%arg0: i32, %arg1: i32, %arg2: i32) -> (i32, i32) {
    %c0_i32 = arith.constant 0 : i32
    %c0_i32_0 = arith.constant 0 : i32
    return %c0_i32, %arg1 : i32, i32
  }
  func.func @transform_3(%arg0: i32, %arg1: i32, %arg2: i32) -> (i32, i32) {
    %c0_i32 = arith.constant 0 : i32
    return %arg0, %arg1 : i32, i32
  }
}

</mosaic_0001>

<llo_original>
// kernel: trafica_pretrain_forward.13
$region0: #{trafica_pretrain_forward.13}
  #allocation0 [shape = 'u32[]', space=smem, size = 0x4, offset = 0x4, fixed_abs, tag = 'smem constant byte address 0x4 - core index']
  #allocation1 [shape = 'u32[144,128]{1,0:T(1,128)}', space=vmem, size = 0x12000, scoped, tag = 'internal scratch']
  %s0 = inlined_call_operand.vmem [shape: f32[16,32], index: 0, kind: input, shape index: {}]
  %s1 = inlined_call_operand.vmem [shape: f32[1,32], index: 1, kind: input, shape index: {}]
  %s2 = inlined_call_operand.vmem [shape: f32[1,32], index: 2, kind: input, shape index: {}]
  %s3 = inlined_call_operand.vmem [shape: f32[16,32], index: 3, kind: output, shape index: {}]
  %s4 = sld [smem:[#allocation0]]
  $region22: #{trafica_pretrain_forward.13} parent=0
    _
  %s6 = ssub.s32 1, %s4
  %s7 = scalar_select 0, %s6, %s4
  // Predicated region
  $region2: #{trafica_pretrain_forward.13} parent=0 // pred_check
    _
  $region3: #{trafica_pretrain_forward.13} parent=0 // pred_check_branch
    %9 = sbr.rel (0) target = $region5
  $region4: #{trafica_pretrain_forward.13} parent=0 // pred_region
    _
  $region5: #{trafica_pretrain_forward.13} parent=0 // pred_fallthru
    _
  // Predicated region
  $region6: #{trafica_pretrain_forward.13} parent=0 // pred_check
    _
  $region7: #{trafica_pretrain_forward.13} parent=0 // pred_check_branch
    %11 = sbr.rel (0) target = $region9
  $region8: #{trafica_pretrain_forward.13} parent=0 // pred_region
    _
  $region9: #{trafica_pretrain_forward.13} parent=0 // pred_fallthru
    _
  // Predicated region
  $region10: #{trafica_pretrain_forward.13} parent=0 // pred_check
    _
  $region11: #{trafica_pretrain_forward.13} parent=0 // pred_check_branch
    %13 = sbr.rel (0) target = $region13
  $region12: #{trafica_pretrain_forward.13} parent=0 // pred_region
    _
  $region13: #{trafica_pretrain_forward.13} parent=0 // pred_fallthru
    _
  %v14 = vld [vmem:[%s0] sm:$0xff]
  %v15 = vld [vmem:[%s0 + $0x8] sm:$0xff]
  %v16 = vld [vmem:[%s1] sm:$0x1]
  %v17 = vld [vmem:[%s2] sm:$0x1]
  %vm18 = vcmask 261120
  %v19 = vsel %vm18, %v14, 0.0
  %20 = vadd.xlane.f32.xlu0 %v19
  %v21 = vpop.xlane.xlu0 %20
  %v22 = vsel %vm18, %v15, 0.0
  %23 = vadd.xlane.f32.xlu0 %v22
  %v24 = vpop.xlane.xlu0 %23
  %v25 = vrcp.pop 32.0
  %v26 = vmul.f32 %v21, %v25
  %v27 = vmul.f32 %v24, %v25
  %v28 = vsub.f32 %v14, %v26
  %v29 = vsub.f32 %v15, %v27
  %v30 = vmul.f32 %v28, %v28
  %v31 = vmul.f32 %v29, %v29
  %v32 = vsel %vm18, %v30, 0.0
  %33 = vadd.xlane.f32.xlu0 %v32
  %v34 = vpop.xlane.xlu0 %33
  %v35 = vsel %vm18, %v31, 0.0
  %36 = vadd.xlane.f32.xlu0 %v35
  %v37 = vpop.xlane.xlu0 %36
  %v38 = vmul.f32 %v34, %v25
  %v39 = vmul.f32 %v37, %v25
  %v40 = vadd.f32 %v38, 1e-12
  %v41 = vadd.f32 %v39, 1e-12
  %v42 = vrsqrt.pop %v40
  %v43 = vrsqrt.pop %v41
  %v44 = vmul.f32 %v28, %v42
  %v45 = vmul.f32 %v29, %v43
  %v47 = vlaneseq
  %v48 = vshrl.u32 %v47, 7
  %v49 = vsub.s32 0, %v48
  %v50 = vrot.slane %v16, %v49
  %v52 = vmul.f32 %v44, %v50
  %v53 = vmul.f32 %v45, %v50
  %v55 = vlaneseq
  %v56 = vshrl.u32 %v55, 7
  %v57 = vsub.s32 0, %v56
  %v58 = vrot.slane %v17, %v57
  %v60 = vadd.f32 %v52, %v58
  %v61 = vadd.f32 %v53, %v58
  %62 = vst.msk [vmem:[%s3] sm:$0xff] %vm18, %v60
  %63 = vst.msk [vmem:[%s3 + $0x8] sm:$0xff] %vm18, %v61
  // Predicated region
  $region14: #{trafica_pretrain_forward.13} parent=0 // pred_check
    _
  $region15: #{trafica_pretrain_forward.13} parent=0 // pred_check_branch
    %65 = sbr.rel (0) target = $region17
  $region16: #{trafica_pretrain_forward.13} parent=0 // pred_region
    _
  $region17: #{trafica_pretrain_forward.13} parent=0 // pred_fallthru
    _
  // Predicated region
  $region18: #{trafica_pretrain_forward.13} parent=0 // pred_check
    _
  $region19: #{trafica_pretrain_forward.13} parent=0 // pred_check_branch
    %67 = sbr.rel (0) target = $region21
  $region20: #{trafica_pretrain_forward.13} parent=0 // pred_region
    _
  $region21: #{trafica_pretrain_forward.13} parent=0 // pred_fallthru
    _

// kernel: trafica_pretrain_forward.14
$region0: #{trafica_pretrain_forward.14}
  #allocation0 [shape = 'u32[]', space=smem, size = 0x4, offset = 0x4, fixed_abs, tag = 'smem constant byte address 0x4 - core index']
  #allocation1 [shape = 'u32[144,128]{1,0:T(1,128)}', space=vmem, size = 0x12000, scoped, tag = 'internal scratch']
  #allocation2 [shape = 'f32[16,96]{1,0:T(8,128)}', space=vmem, size = 0x2000, scoped, tag = 'scratch operand']
  %s0 = inlined_call_operand.vmem [shape: bf16[16,32], index: 0, kind: input, shape index: {}]
  %s1 = inlined_call_operand.vmem [shape: bf16[32,96], index: 1, kind: input, shape index: {}]
  %s2 = inlined_call_operand.vmem [shape: f32[1,96], index: 2, kind: input, shape index: {}]
  %s3 = inlined_call_operand.vmem [shape: bf16[16,96], index: 3, kind: output, shape index: {}]
  %s4 = sld [smem:[#allocation0]]
  $region30: #{trafica_pretrain_forward.14} parent=0
    _
  %s6 = ssub.s32 1, %s4
  %s7 = scalar_select 0, %s6, %s4
  // Predicated region
  $region2: #{trafica_pretrain_forward.14} parent=0 // pred_check
    _
  $region3: #{trafica_pretrain_forward.14} parent=0 // pred_check_branch
    %9 = sbr.rel (0) target = $region5
  $region4: #{trafica_pretrain_forward.14} parent=0 // pred_region
    _
  $region5: #{trafica_pretrain_forward.14} parent=0 // pred_fallthru
    _
  // Predicated region
  $region6: #{trafica_pretrain_forward.14} parent=0 // pred_check
    _
  $region7: #{trafica_pretrain_forward.14} parent=0 // pred_check_branch
    %11 = sbr.rel (0) target = $region9
  $region8: #{trafica_pretrain_forward.14} parent=0 // pred_region
    _
  $region9: #{trafica_pretrain_forward.14} parent=0 // pred_fallthru
    _
  // Predicated region
  $region10: #{trafica_pretrain_forward.14} parent=0 // pred_check
    _
  $region11: #{trafica_pretrain_forward.14} parent=0 // pred_check_branch
    %13 = sbr.rel (0) target = $region13
  $region12: #{trafica_pretrain_forward.14} parent=0 // pred_region
    _
  $region13: #{trafica_pretrain_forward.14} parent=0 // pred_fallthru
    _
  %p15 = scmp.eq.s32.totalorder 0, 0
  // Predicated region
  $region14: #{trafica_pretrain_forward.14} parent=0 // pred_check
    %p16 = pneg %p15
  $region15: #{trafica_pretrain_forward.14} parent=0 // pred_check_branch
    %18 = sbr.rel (%p16) target = $region17
  $region16: #{trafica_pretrain_forward.14} parent=0 // pred_region
    %vm19 = vcmask 785408
    %20 = vst.msk [vmem:[#allocation2] sm:$0xff] %vm19, 0.0
    %21 = vst.msk [vmem:[#allocation2 + $0x8] sm:$0xff] %vm19, 0.0
  $region17: #{trafica_pretrain_forward.14} parent=0 // pred_fallthru
    _
  %v22 = vld [vmem:[#allocation2] sm:$0xff]
  %v23 = vld [vmem:[#allocation2 + $0x8] sm:$0xff]
  %v24 = vld [vmem:[%s0] sm:$0xf]
  %v25 = vld [vmem:[%s0 + $0x4] sm:$0xf]
  %v26 = vld [vmem:[%s1] sm:$0xf]
  %v27 = vld [vmem:[%s1 + $0x4] sm:$0xf]
  %v28 = vld [vmem:[%s1 + $0x8] sm:$0xf]
  %v29 = vld [vmem:[%s1 + $0xc] sm:$0xf]
  %v32 = vunpack.c.l.b16 %v24
  %v33 = vunpack.c.l.b16 %v25
  %v34 = vpack.c.b16 %v33, %v32
  %v39 = vunpack.c.l.b16 %v26
  %v40 = vunpack.c.l.b16 %v27
  %v41 = vunpack.c.l.b16 %v28
  %v42 = vunpack.c.l.b16 %v29
  %v43 = vpack.c.b16 %v40, %v39
  %v44 = vpack.c.b16 %v42, %v41
  %vm47 = vcmask 261120
  %v49 = vsel %vm47, %v34, 0
  %51 = vmatprep.subr.bf16.mxu0 0
  %52 = vmatpush1.bf16.msra.mxu0 %v43
  %53 = vmatprep.subr.bf16.mxu0 0
  %54 = vmatpush1.bf16.msra.mxu0 %v44
  %55 = vmatprep.subr.bf16.mxu0 0
  %56 = vmatpush1.bf16.msra.mxu0 0
  %57 = vmatprep.subr.bf16.mxu0 0
  %58 = vmatpush1.bf16.msra.mxu0 0
  %59 = vmatprep.subr.bf16.mxu0 0
  %60 = vmatpush1.bf16.msra.mxu0 0
  %61 = vmatprep.subr.bf16.mxu0 0
  %62 = vmatpush1.bf16.msra.mxu0 0
  %63 = vmatprep.subr.bf16.mxu0 0
  %64 = vmatpush1.bf16.msra.mxu0 0
  %65 = vmatprep.subr.bf16.mxu0 0
  %66 = vmatpush1.bf16.msra.mxu0 0
  %67 = vmatprep.subr.bf16.mxu0 0
  %68 = vmatpush1.bf16.msra.mxu0 0
  %69 = vmatprep.subr.bf16.mxu0 0
  %70 = vmatpush1.bf16.msra.mxu0 0
  %71 = vmatprep.subr.bf16.mxu0 0
  %72 = vmatpush1.bf16.msra.mxu0 0
  %73 = vmatprep.subr.bf16.mxu0 0
  %74 = vmatpush1.bf16.msra.mxu0 0
  %75 = vmatprep.subr.bf16.mxu0 0
  %76 = vmatpush1.bf16.msra.mxu0 0
  %77 = vmatprep.subr.bf16.mxu0 0
  %78 = vmatpush1.bf16.msra.mxu0 0
  %79 = vmatprep.subr.bf16.mxu0 0
  %80 = vmatpush1.bf16.msra.mxu0 0
  %81 = vmatprep.subr.bf16.mxu0 0
  %82 = vmatpush1.bf16.msra.mxu0 0
  %83 = vmatprep.mubr.bf16.mxu0 0
  %84 = vmatmul.mubr.bf16.gmra.mrb[0].mxu0 %v49
  %v85 = vpop.f32.mrb[0].mxu0
  %v86 = vadd.f32 0.0, %v85
  %v87 = vpop.f32.mrb[0].mxu0
  %v88 = vpop.f32.mrb[0].mxu0
  %v89 = vadd.f32 0.0, %v88
  %v90 = vpop.f32.mrb[0].mxu0
  %91 = vdwg.mxu0
  %v92 = vadd.f32 %v22, %v86
  %v93 = vadd.f32 %v23, %v89
  %vm94 = vcmask 785408
  %95 = vst.msk [vmem:[#allocation2] sm:$0xff] %vm94, %v92
  %96 = vst.msk [vmem:[#allocation2 + $0x8] sm:$0xff] %vm94, %v93
  // Predicated region
  $region18: #{trafica_pretrain_forward.14} parent=0 // pred_check
    %p97 = pneg %p15
  $region19: #{trafica_pretrain_forward.14} parent=0 // pred_check_branch
    %99 = sbr.rel (%p97) target = $region21
  $region20: #{trafica_pretrain_forward.14} parent=0 // pred_region
    %v100 = vld [vmem:[#allocation2] sm:$0xff]
    %v101 = vld [vmem:[#allocation2 + $0x8] sm:$0xff]
    %v102 = vld [vmem:[%s2] sm:$0x1]
    %v104 = vlaneseq
    %v105 = vshrl.u32 %v104, 7
    %v106 = vsub.s32 0, %v105
    %v107 = vrot.slane %v102, %v106
    %v109 = vadd.f32 %v100, %v107
    %v110 = vadd.f32 %v101, %v107
    %v111 = vpack.c.bf16 %v110, %v109
    %v113 = vunpack.c.l.b16 %v111
    %v114 = vunpack.c.h.b16 %v111
    %v115 = vpack.c.b16 %v113, %v113
    %v116 = vpack.c.b16 %v114, %v114
    %vm119 = vcmask 781312
    %120 = vst.msk [vmem:[%s3] sm:$0xf] %vm119, %v115
    %121 = vst.msk [vmem:[%s3 + $0x4] sm:$0xf] %vm119, %v116
  $region21: #{trafica_pretrain_forward.14} parent=0 // pred_fallthru
    _
  // Predicated region
  $region22: #{trafica_pretrain_forward.14} parent=0 // pred_check
    _
  $region23: #{trafica_pretrain_forward.14} parent=0 // pred_check_branch
    %123 = sbr.rel (0) target = $region25
  $region24: #{trafica_pretrain_forward.14} parent=0 // pred_region
    _
  $region25: #{trafica_pretrain_forward.14} parent=0 // pred_fallthru
    _
  // Predicated region
  $region26: #{trafica_pretrain_forward.14} parent=0 // pred_check
    _
  $region27: #{trafica_pretrain_forward.14} parent=0 // pred_check_branch
    %125 = sbr.rel (0) target = $region29
  $region28: #{trafica_pretrain_forward.14} parent=0 // pred_region
    _
  $region29: #{trafica_pretrain_forward.14} parent=0 // pred_fallthru
    _

// kernel: trafica_pretrain_forward.16
$region0: #{trafica_pretrain_forward.16}
  #allocation0 [shape = 'u32[]', space=smem, size = 0x4, offset = 0x4, fixed_abs, tag = 'smem constant byte address 0x4 - core index']
  #allocation1 [shape = 'u32[144,128]{1,0:T(1,128)}', space=vmem, size = 0x12000, scoped, tag = 'internal scratch']
  #allocation2 [shape = 'f32[16,32]{1,0:T(8,128)}', space=vmem, size = 0x2000, scoped, tag = 'scratch operand']
  %s0 = inlined_call_operand.vmem [shape: bf16[16,32], index: 0, kind: input, shape index: {}]
  %s1 = inlined_call_operand.vmem [shape: bf16[32,32], index: 1, kind: input, shape index: {}]
  %s2 = inlined_call_operand.vmem [shape: f32[1,32], index: 2, kind: input, shape index: {}]
  %s3 = inlined_call_operand.vmem [shape: f32[16,32], index: 3, kind: input, shape index: {}]
  %s4 = inlined_call_operand.vmem [shape: f32[1,32], index: 4, kind: input, shape index: {}]
  %s5 = inlined_call_operand.vmem [shape: f32[1,32], index: 5, kind: input, shape index: {}]
  %s6 = inlined_call_operand.vmem [shape: f32[16,32], index: 6, kind: output, shape index: {}]
  %s7 = sld [smem:[#allocation0]]
  $region42: #{trafica_pretrain_forward.16} parent=0
    _
  %s9 = ssub.s32 1, %s7
  %s10 = scalar_select 0, %s9, %s7
  // Predicated region
  $region2: #{trafica_pretrain_forward.16} parent=0 // pred_check
    _
  $region3: #{trafica_pretrain_forward.16} parent=0 // pred_check_branch
    %12 = sbr.rel (0) target = $region5
  $region4: #{trafica_pretrain_forward.16} parent=0 // pred_region
    _
  $region5: #{trafica_pretrain_forward.16} parent=0 // pred_fallthru
    _
  // Predicated region
  $region6: #{trafica_pretrain_forward.16} parent=0 // pred_check
    _
  $region7: #{trafica_pretrain_forward.16} parent=0 // pred_check_branch
    %14 = sbr.rel (0) target = $region9
  $region8: #{trafica_pretrain_forward.16} parent=0 // pred_region
    _
  $region9: #{trafica_pretrain_forward.16} parent=0 // pred_fallthru
    _
  // Predicated region
  $region10: #{trafica_pretrain_forward.16} parent=0 // pred_check
    _
  $region11: #{trafica_pretrain_forward.16} parent=0 // pred_check_branch
    %16 = sbr.rel (0) target = $region13
  $region12: #{trafica_pretrain_forward.16} parent=0 // pred_region
    _
  $region13: #{trafica_pretrain_forward.16} parent=0 // pred_fallthru
    _
  // Predicated region
  $region14: #{trafica_pretrain_forward.16} parent=0 // pred_check
    _
  $region15: #{trafica_pretrain_forward.16} parent=0 // pred_check_branch
    %18 = sbr.rel (0) target = $region17
  $region16: #{trafica_pretrain_forward.16} parent=0 // pred_region
    _
  $region17: #{trafica_pretrain_forward.16} parent=0 // pred_fallthru
    _
  // Predicated region
  $region18: #{trafica_pretrain_forward.16} parent=0 // pred_check
    _
  $region19: #{trafica_pretrain_forward.16} parent=0 // pred_check_branch
    %20 = sbr.rel (0) target = $region21
  $region20: #{trafica_pretrain_forward.16} parent=0 // pred_region
    _
  $region21: #{trafica_pretrain_forward.16} parent=0 // pred_fallthru
    _
  // Predicated region
  $region22: #{trafica_pretrain_forward.16} parent=0 // pred_check
    _
  $region23: #{trafica_pretrain_forward.16} parent=0 // pred_check_branch
    %22 = sbr.rel (0) target = $region25
  $region24: #{trafica_pretrain_forward.16} parent=0 // pred_region
    _
  $region25: #{trafica_pretrain_forward.16} parent=0 // pred_fallthru
    _
  %p24 = scmp.eq.s32.totalorder 0, 0
  // Predicated region
  $region26: #{trafica_pretrain_forward.16} parent=0 // pred_check
    %p25 = pneg %p24
  $region27: #{trafica_pretrain_forward.16} parent=0 // pred_check_branch
    %27 = sbr.rel (%p25) target = $region29
  $region28: #{trafica_pretrain_forward.16} parent=0 // pred_region
    %vm28 = vcmask 261120
    %29 = vst.msk [vmem:[#allocation2] sm:$0xff] %vm28, 0.0
    %30 = vst.msk [vmem:[#allocation2 + $0x8] sm:$0xff] %vm28, 0.0
  $region29: #{trafica_pretrain_forward.16} parent=0 // pred_fallthru
    _
  %v31 = vld [vmem:[#allocation2] sm:$0xff]
  %v32 = vld [vmem:[#allocation2 + $0x8] sm:$0xff]
  %v33 = vld [vmem:[%s0] sm:$0xf]
  %v34 = vld [vmem:[%s0 + $0x4] sm:$0xf]
  %v35 = vld [vmem:[%s1] sm:$0xf]
  %v36 = vld [vmem:[%s1 + $0x4] sm:$0xf]
  %v37 = vld [vmem:[%s1 + $0x8] sm:$0xf]
  %v38 = vld [vmem:[%s1 + $0xc] sm:$0xf]
  %v41 = vunpack.c.l.b16 %v33
  %v42 = vunpack.c.l.b16 %v34
  %v43 = vpack.c.b16 %v42, %v41
  %v48 = vunpack.c.l.b16 %v35
  %v49 = vunpack.c.l.b16 %v36
  %v50 = vunpack.c.l.b16 %v37
  %v51 = vunpack.c.l.b16 %v38
  %v52 = vpack.c.b16 %v49, %v48
  %v53 = vpack.c.b16 %v51, %v50
  %vm56 = vcmask 261120
  %v58 = vsel %vm56, %v43, 0
  %60 = vmatprep.subr.bf16.mxu0 0
  %61 = vmatpush1.bf16.msra.mxu0 %v52
  %62 = vmatprep.subr.bf16.mxu0 0
  %63 = vmatpush1.bf16.msra.mxu0 %v53
  %64 = vmatprep.subr.bf16.mxu0 0
  %65 = vmatpush1.bf16.msra.mxu0 0
  %66 = vmatprep.subr.bf16.mxu0 0
  %67 = vmatpush1.bf16.msra.mxu0 0
  %68 = vmatprep.subr.bf16.mxu0 0
  %69 = vmatpush1.bf16.msra.mxu0 0
  %70 = vmatprep.subr.bf16.mxu0 0
  %71 = vmatpush1.bf16.msra.mxu0 0
  %72 = vmatprep.subr.bf16.mxu0 0
  %73 = vmatpush1.bf16.msra.mxu0 0
  %74 = vmatprep.subr.bf16.mxu0 0
  %75 = vmatpush1.bf16.msra.mxu0 0
  %76 = vmatprep.subr.bf16.mxu0 0
  %77 = vmatpush1.bf16.msra.mxu0 0
  %78 = vmatprep.subr.bf16.mxu0 0
  %79 = vmatpush1.bf16.msra.mxu0 0
  %80 = vmatprep.subr.bf16.mxu0 0
  %81 = vmatpush1.bf16.msra.mxu0 0
  %82 = vmatprep.subr.bf16.mxu0 0
  %83 = vmatpush1.bf16.msra.mxu0 0
  %84 = vmatprep.subr.bf16.mxu0 0
  %85 = vmatpush1.bf16.msra.mxu0 0
  %86 = vmatprep.subr.bf16.mxu0 0
  %87 = vmatpush1.bf16.msra.mxu0 0
  %88 = vmatprep.subr.bf16.mxu0 0
  %89 = vmatpush1.bf16.msra.mxu0 0
  %90 = vmatprep.subr.bf16.mxu0 0
  %91 = vmatpush1.bf16.msra.mxu0 0
  %92 = vmatprep.mubr.bf16.mxu0 0
  %93 = vmatmul.mubr.bf16.gmra.mrb[0].mxu0 %v58
  %v94 = vpop.f32.mrb[0].mxu0
  %v95 = vadd.f32 0.0, %v94
  %v96 = vpop.f32.mrb[0].mxu0
  %v97 = vpop.f32.mrb[0].mxu0
  %v98 = vadd.f32 0.0, %v97
  %v99 = vpop.f32.mrb[0].mxu0
  %100 = vdwg.mxu0
  %v101 = vadd.f32 %v31, %v95
  %v102 = vadd.f32 %v32, %v98
  %103 = vst.msk [vmem:[#allocation2] sm:$0xff] %vm56, %v101
  %104 = vst.msk [vmem:[#allocation2 + $0x8] sm:$0xff] %vm56, %v102
  // Predicated region
  $region30: #{trafica_pretrain_forward.16} parent=0 // pred_check
    %p105 = pneg %p24
  $region31: #{trafica_pretrain_forward.16} parent=0 // pred_check_branch
    %107 = sbr.rel (%p105) target = $region33
  $region32: #{trafica_pretrain_forward.16} parent=0 // pred_region
    %v108 = vld [vmem:[#allocation2] sm:$0xff]
    %v109 = vld [vmem:[#allocation2 + $0x8] sm:$0xff]
    %v110 = vld [vmem:[%s2] sm:$0x1]
    %v112 = vlaneseq
    %v113 = vshrl.u32 %v112, 7
    %v114 = vsub.s32 0, %v113
    %v115 = vrot.slane %v110, %v114
    %v117 = vadd.f32 %v108, %v115
    %v118 = vadd.f32 %v109, %v115
    %v119 = vld [vmem:[%s3] sm:$0xff]
    %v120 = vld [vmem:[%s3 + $0x8] sm:$0xff]
    %v121 = vadd.f32 %v117, %v119
    %v122 = vadd.f32 %v118, %v120
    %v123 = vld [vmem:[%s4] sm:$0x1]
    %v124 = vld [vmem:[%s5] sm:$0x1]
    %v125 = vsel %vm56, %v121, 0.0
    %126 = vadd.xlane.f32.xlu0 %v125
    %v127 = vpop.xlane.xlu0 %126
    %v128 = vsel %vm56, %v122, 0.0
    %129 = vadd.xlane.f32.xlu0 %v128
    %v130 = vpop.xlane.xlu0 %129
    %v131 = vrcp.pop 32.0
    %v132 = vmul.f32 %v127, %v131
    %v133 = vmul.f32 %v130, %v131
    %v134 = vsub.f32 %v121, %v132
    %v135 = vsub.f32 %v122, %v133
    %v136 = vmul.f32 %v134, %v134
    %v137 = vmul.f32 %v135, %v135
    %v138 = vsel %vm56, %v136, 0.0
    %139 = vadd.xlane.f32.xlu0 %v138
    %v140 = vpop.xlane.xlu0 %139
    %v141 = vsel %vm56, %v137, 0.0
    %142 = vadd.xlane.f32.xlu0 %v141
    %v143 = vpop.xlane.xlu0 %142
    %v144 = vmul.f32 %v140, %v131
    %v145 = vmul.f32 %v143, %v131
    %v146 = vadd.f32 %v144, 1e-12
    %v147 = vadd.f32 %v145, 1e-12
    %v148 = vrsqrt.pop %v146
    %v149 = vrsqrt.pop %v147
    %v150 = vmul.f32 %v134, %v148
    %v151 = vmul.f32 %v135, %v149
    %v153 = vlaneseq
    %v154 = vshrl.u32 %v153, 7
    %v155 = vsub.s32 0, %v154
    %v156 = vrot.slane %v123, %v155
    %v158 = vmul.f32 %v150, %v156
    %v159 = vmul.f32 %v151, %v156
    %v161 = vlaneseq
    %v162 = vshrl.u32 %v161, 7
    %v163 = vsub.s32 0, %v162
    %v164 = vrot.slane %v124, %v163
    %v166 = vadd.f32 %v158, %v164
    %v167 = vadd.f32 %v159, %v164
    %168 = vst.msk [vmem:[%s6] sm:$0xff] %vm56, %v166
    %169 = vst.msk [vmem:[%s6 + $0x8] sm:$0xff] %vm56, %v167
  $region33: #{trafica_pretrain_forward.16} parent=0 // pred_fallthru
    _
  // Predicated region
  $region34: #{trafica_pretrain_forward.16} parent=0 // pred_check
    _
  $region35: #{trafica_pretrain_forward.16} parent=0 // pred_check_branch
    %171 = sbr.rel (0) target = $region37
  $region36: #{trafica_pretrain_forward.16} parent=0 // pred_region
    _
  $region37: #{trafica_pretrain_forward.16} parent=0 // pred_fallthru
    _
  // Predicated region
  $region38: #{trafica_pretrain_forward.16} parent=0 // pred_check
    _
  $region39: #{trafica_pretrain_forward.16} parent=0 // pred_check_branch
    %173 = sbr.rel (0) target = $region41
  $region40: #{trafica_pretrain_forward.16} parent=0 // pred_region
    _
  $region41: #{trafica_pretrain_forward.16} parent=0 // pred_fallthru
    _

// kernel: trafica_pretrain_forward.15
$region0: #{trafica_pretrain_forward.15}
  #allocation0 [shape = 'u32[]', space=smem, size = 0x4, offset = 0x4, fixed_abs, tag = 'smem constant byte address 0x4 - core index']
  #allocation1 [shape = 'u32[144,128]{1,0:T(1,128)}', space=vmem, size = 0x12000, scoped, tag = 'internal scratch']
  %s0 = inlined_call_operand.vmem [shape: bf16[2,8,96], index: 0, kind: input, shape index: {}]
  %s1 = inlined_call_operand.vmem [shape: f32[2,1,8], index: 1, kind: input, shape index: {}]
  %s2 = inlined_call_operand.vmem [shape: bf16[2,8,32], index: 2, kind: output, shape index: {}]
  %s3 = sld [smem:[#allocation0]]
  $region41: #{trafica_pretrain_forward.15} parent=0
    _
  %s5 = ssub.s32 1, %s3
  %s6 = scalar_select 0, %s5, %s3
  loop: start=0, step=1, limit=4
  $region2: #{trafica_pretrain_forward.15} parent=0 // loop_pre_header
    _
  $region3: #{trafica_pretrain_forward.15} parent=0 // loop_header
    %s8 = sphi 0, %s12
    %p9 = scmp.ge.s32.totalorder %s8, 4
    %s18 = sphi 0, %s20
    %s21 = sphi 0, %s18
    %s22 = sphi 0, %s21
    %s38 = sphi 0, %s22
    %s44 = sphi 0, %s46
    %s47 = sphi 0, %s44
    %s48 = sphi 0, %s47
    %s64 = sphi 0, %s48
    %s70 = sphi 0, %s72
    %s73 = sphi 0, %s70
    %s74 = sphi 0, %s73
    %s90 = sphi 0, %s74
  $region4: #{trafica_pretrain_forward.15} parent=0 // loop_header_branch
    %11 = sbr.rel (%p9) target = $region8
  $region5: #{trafica_pretrain_forward.15} parent=0 // loop_body
    %s13 = ssub.s32 %s8, 1
    %s14 = ssub.s32 %s8, 2
    %s15 = sadd.s32 %s8, 1
    %s16 = ssub.s32 %s8, %s15
    %p17 = scmp.eq.s32.totalorder %s16, 0
    %s19 = sadd.s32 %s18, 1
    %s20 = scalar_select %p17, %s18, %s19
    %p23 = pneg %p17
    %p24 = scmp.eq.s32.totalorder %s8, 1
    %p25 = por %p23, %p24
    %p26 = scmp.ne.s32.totalorder %s18, %s21
    %p27 = scmp.eq.s32.totalorder %s8, 0
    %p28 = por %p26, %p27
    %p29 = scmp.ne.s32.totalorder %s18, %s21
    %p30 = scmp.eq.s32.totalorder %s13, 1
    %p31 = por %p29, %p30
    %p32 = scmp.ne.s32.totalorder %s21, %s22
    %p33 = scmp.eq.s32.totalorder %s13, 0
    %p34 = por %p32, %p33
    %p35 = scmp.ne.s32.totalorder %s21, %s22
    %p36 = scmp.eq.s32.totalorder %s14, 1
    %p37 = por %p35, %p36
    %p39 = scmp.ne.s32.totalorder %s22, %s38
    %p40 = scmp.eq.s32.totalorder %s14, 0
    %p41 = por %p39, %p40
    %s42 = ssub.s32 %s8, %s15
    %p43 = scmp.eq.s32.totalorder %s42, 0
    %s45 = sadd.s32 %s44, 1
    %s46 = scalar_select %p43, %s44, %s45
    %p49 = pneg %p43
    %p50 = scmp.eq.s32.totalorder %s8, 1
    %p51 = por %p49, %p50
    %p52 = scmp.ne.s32.totalorder %s44, %s47
    %p53 = scmp.eq.s32.totalorder %s8, 0
    %p54 = por %p52, %p53
    %p55 = scmp.ne.s32.totalorder %s44, %s47
    %p56 = scmp.eq.s32.totalorder %s13, 1
    %p57 = por %p55, %p56
    %p58 = scmp.ne.s32.totalorder %s47, %s48
    %p59 = scmp.eq.s32.totalorder %s13, 0
    %p60 = por %p58, %p59
    %p61 = scmp.ne.s32.totalorder %s47, %s48
    %p62 = scmp.eq.s32.totalorder %s14, 1
    %p63 = por %p61, %p62
    %p65 = scmp.ne.s32.totalorder %s48, %s64
    %p66 = scmp.eq.s32.totalorder %s14, 0
    %p67 = por %p65, %p66
    %s68 = ssub.s32 %s8, %s15
    %p69 = scmp.eq.s32.totalorder %s68, 0
    %s71 = sadd.s32 %s70, 1
    %s72 = scalar_select %p69, %s70, %s71
    %p75 = pneg %p69
    %p76 = scmp.eq.s32.totalorder %s8, 1
    %p77 = por %p75, %p76
    %p78 = scmp.ne.s32.totalorder %s70, %s73
    %p79 = scmp.eq.s32.totalorder %s8, 0
    %p80 = por %p78, %p79
    %p81 = scmp.ne.s32.totalorder %s70, %s73
    %p82 = scmp.eq.s32.totalorder %s13, 1
    %p83 = por %p81, %p82
    %p84 = scmp.ne.s32.totalorder %s73, %s74
    %p85 = scmp.eq.s32.totalorder %s13, 0
    %p86 = por %p84, %p85
    %p87 = scmp.ne.s32.totalorder %s73, %s74
    %p88 = scmp.eq.s32.totalorder %s14, 1
    %p89 = por %p87, %p88
    %p91 = scmp.ne.s32.totalorder %s74, %s90
    %p92 = scmp.eq.s32.totalorder %s14, 0
    %p93 = por %p91, %p92
    %p94 = scmp.le.s32.totalorder 1, %s8
    %p95 = scmp.lt.s32.totalorder %s8, 3
    %p96 = pnand %p94, %p95
    %p97 = pneg %p96
    // Predicated region
    $region9: #{trafica_pretrain_forward.15} parent=5 // pred_check
      _
    $region10: #{trafica_pretrain_forward.15} parent=5 // pred_check_branch
      %99 = sbr.rel (%p96) target = $region12
    $region11: #{trafica_pretrain_forward.15} parent=5 // pred_region
      %s100 = ssub.s32 %s8, 1
    $region12: #{trafica_pretrain_forward.15} parent=5 // pred_fallthru
      _
    %p101 = scmp.lt.s32.totalorder %s8, 2
    // Predicated region
    $region13: #{trafica_pretrain_forward.15} parent=5 // pred_check
      %p102 = pneg %p101
    $region14: #{trafica_pretrain_forward.15} parent=5 // pred_check_branch
      %104 = sbr.rel (%p102) target = $region16
    $region15: #{trafica_pretrain_forward.15} parent=5 // pred_region
      // Predicated region
      $region17: #{trafica_pretrain_forward.15} parent=15 // pred_check
        %p105 = pneg %p28
      $region18: #{trafica_pretrain_forward.15} parent=15 // pred_check_branch
        %107 = sbr.rel (%p105) target = $region20
      $region19: #{trafica_pretrain_forward.15} parent=15 // pred_region
        %p108 = scmp.lt.s32.totalorder %s8, 1
        %s109 = scalar_select %p108, %s8, 1
        %s110 = smul.addr %s109, 4
        %s111 = scalar_lea.vmem %s0, %s110
      $region20: #{trafica_pretrain_forward.15} parent=15 // pred_fallthru
        _
      // Predicated region
      $region21: #{trafica_pretrain_forward.15} parent=15 // pred_check
        %p112 = pneg %p54
      $region22: #{trafica_pretrain_forward.15} parent=15 // pred_check_branch
        %114 = sbr.rel (%p112) target = $region24
      $region23: #{trafica_pretrain_forward.15} parent=15 // pred_region
        %p115 = scmp.lt.s32.totalorder %s8, 1
        %s116 = scalar_select %p115, %s8, 1
        %s117 = scalar_lea.vmem %s1, %s116
      $region24: #{trafica_pretrain_forward.15} parent=15 // pred_fallthru
        _
    $region16: #{trafica_pretrain_forward.15} parent=5 // pred_fallthru
      _
    %p118 = scmp.le.s32.totalorder 1, %s8
    %p119 = scmp.lt.s32.totalorder %s8, 3
    %p120 = pnand %p118, %p119
    %p121 = pneg %p120
    // Predicated region
    $region25: #{trafica_pretrain_forward.15} parent=5 // pred_check
      _
    $region26: #{trafica_pretrain_forward.15} parent=5 // pred_check_branch
      %123 = sbr.rel (%p120) target = $region28
    $region27: #{trafica_pretrain_forward.15} parent=5 // pred_region
      %s124 = ssub.s32 %s8, 1
      %p125 = scmp.lt.s32.totalorder %s13, 1
      %s126 = scalar_select %p125, %s13, 1
      %s127 = smul.addr %s126, 4
      %s128 = scalar_lea.vmem %s0, %s127
      %p129 = pneg %p34
      %p130 = pneg %p31
      %p131 = scmp.lt.s32.totalorder %s13, 1
      %s132 = scalar_select %p131, %s13, 1
      %s133 = scalar_lea.vmem %s1, %s132
      %p134 = pneg %p60
      %p135 = pneg %p57
      %p136 = pneg %p86
      %p137 = pneg %p83
      %p138 = scmp.lt.s32.totalorder %s13, 1
      %s139 = scalar_select %p138, %s13, 1
      %s140 = smul.addr %s139, 4
      %s141 = scalar_lea.vmem %s2, %s140
      %p142 = scmp.lt.s32.totalorder %s13, 1
      %s143 = scalar_select %p142, %s13, 1
      %s144 = smul.addr %s143, 4
      %s145 = scalar_lea.vmem %s0, %s144
      %p146 = scmp.lt.s32.totalorder %s13, 1
      %s147 = scalar_select %p146, %s13, 1
      %s148 = scalar_lea.vmem %s1, %s147
      %p149 = scmp.lt.s32.totalorder %s13, 1
      %s150 = scalar_select %p149, %s13, 1
      %s151 = smul.addr %s150, 4
      %s152 = scalar_lea.vmem %s2, %s151
      %v154 = vld [vmem:[%s145] sm:$0xf]
      %v155 = vld [vmem:[%s148] sm:$0x1]
      %v157 = vunpack.c.l.b16 %v154
      %v158 = vpack.c.b16 %v157, %v157
      %159 = vrot.lane.b32.xlu0 %v158, 96
      %v160 = vpop.permute.xlu0 %159
      %vm161 = vcmask 130048
      %v163 = vsel %vm161, %v154, 0
      %v166 = vsel %vm161, %v160, 0
      %168 = vmatprep.subr.bf16.mxu0 0
      %169 = vmatpush1.bf16.xpose.msra.mxu0 %v166
      %170 = vmatprep.subr.bf16.mxu0 0
      %171 = vmatpush1.bf16.xpose.msra.mxu0 0
      %172 = vmatprep.subr.bf16.mxu0 0
      %173 = vmatpush1.bf16.xpose.msra.mxu0 0
      %174 = vmatprep.subr.bf16.mxu0 0
      %175 = vmatpush1.bf16.xpose.msra.mxu0 0
      %176 = vmatprep.subr.bf16.mxu0 0
      %177 = vmatpush1.bf16.xpose.msra.mxu0 0
      %178 = vmatprep.subr.bf16.mxu0 0
      %179 = vmatpush1.bf16.xpose.msra.mxu0 0
      %180 = vmatprep.subr.bf16.mxu0 0
      %181 = vmatpush1.bf16.xpose.msra.mxu0 0
      %182 = vmatprep.subr.bf16.mxu0 0
      %183 = vmatpush1.bf16.xpose.msra.mxu0 0
      %184 = vmatprep.subr.bf16.mxu0 0
      %185 = vmatpush1.bf16.xpose.msra.mxu0 0
      %186 = vmatprep.subr.bf16.mxu0 0
      %187 = vmatpush1.bf16.xpose.msra.mxu0 0
      %188 = vmatprep.subr.bf16.mxu0 0
      %189 = vmatpush1.bf16.xpose.msra.mxu0 0
      %190 = vmatprep.subr.bf16.mxu0 0
      %191 = vmatpush1.bf16.xpose.msra.mxu0 0
      %192 = vmatprep.subr.bf16.mxu0 0
      %193 = vmatpush1.bf16.xpose.msra.mxu0 0
      %194 = vmatprep.subr.bf16.mxu0 0
      %195 = vmatpush1.bf16.xpose.msra.mxu0 0
      %196 = vmatprep.subr.bf16.mxu0 0
      %197 = vmatpush1.bf16.xpose.msra.mxu0 0
      %198 = vmatprep.subr.bf16.mxu0 0
      %199 = vmatpush1.bf16.xpose.msra.mxu0 0
      %200 = vmatprep.mubr.bf16.mxu0 0
      %201 = vmatmul.mubr.bf16.gmra.mrb[0].mxu0 %v163
      %v202 = vpop.f32.mrb[0].mxu0
      %v203 = vadd.f32 0.0, %v202
      %v204 = vpop.f32.mrb[0].mxu0
      %v205 = vpop.f32.mrb[0].mxu0
      %v206 = vpop.f32.mrb[0].mxu0
      %207 = vdwg.mxu0
      %v208 = vmul.f32 %v203, 0.25
      %v210 = vlaneseq
      %v211 = vshrl.u32 %v210, 7
      %v212 = vsub.s32 0, %v211
      %v213 = vrot.slane %v155, %v212
      %v215 = vadd.f32 %v208, %v213
      %vm216 = vcmask 64512
      %v217 = vsel %vm216, %v215, -inf
      %218 = vmax.xlane.f32.xlu0 %v217
      %v219 = vpop.xlane.xlu0 %218
      %v220 = vsub.f32 %v215, %v219
      %v221 = vmul.f32 %v220, 1.442695
      %v222 = vpow.pop %v221
      %v223 = vsel %vm216, %v222, 0.0
      %224 = vadd.xlane.f32.xlu0 %v223
      %v225 = vpop.xlane.xlu0 %224
      %v226 = vrcp.pop %v225
      %v227 = vmul.f32 %v222, %v226
      %v228 = vpack.c.bf16 %v227, %v227
      %229 = vrot.lane.b32.xlu0 %v158, 64
      %v230 = vpop.permute.xlu0 %229
      %v232 = vsel %vm216, %v228, 0
      %vm234 = vcmask 1043456
      %v236 = vsel %vm234, %v230, 0
      %238 = vmatprep.subr.bf16.mxu0 0
      %239 = vmatpush1.bf16.msra.mxu0 %v236
      %240 = vmatprep.subr.bf16.mxu0 0
      %241 = vmatpush1.bf16.msra.mxu0 0
      %242 = vmatprep.subr.bf16.mxu0 0
      %243 = vmatpush1.bf16.msra.mxu0 0
      %244 = vmatprep.subr.bf16.mxu0 0
      %245 = vmatpush1.bf16.msra.mxu0 0
      %246 = vmatprep.subr.bf16.mxu0 0
      %247 = vmatpush1.bf16.msra.mxu0 0
      %248 = vmatprep.subr.bf16.mxu0 0
      %249 = vmatpush1.bf16.msra.mxu0 0
      %250 = vmatprep.subr.bf16.mxu0 0
      %251 = vmatpush1.bf16.msra.mxu0 0
      %252 = vmatprep.subr.bf16.mxu0 0
      %253 = vmatpush1.bf16.msra.mxu0 0
      %254 = vmatprep.subr.bf16.mxu0 0
      %255 = vmatpush1.bf16.msra.mxu0 0
      %256 = vmatprep.subr.bf16.mxu0 0
      %257 = vmatpush1.bf16.msra.mxu0 0
      %258 = vmatprep.subr.bf16.mxu0 0
      %259 = vmatpush1.bf16.msra.mxu0 0
      %260 = vmatprep.subr.bf16.mxu0 0
      %261 = vmatpush1.bf16.msra.mxu0 0
      %262 = vmatprep.subr.bf16.mxu0 0
      %263 = vmatpush1.bf16.msra.mxu0 0
      %264 = vmatprep.subr.bf16.mxu0 0
      %265 = vmatpush1.bf16.msra.mxu0 0
      %266 = vmatprep.subr.bf16.mxu0 0
      %267 = vmatpush1.bf16.msra.mxu0 0
      %268 = vmatprep.subr.bf16.mxu0 0
      %269 = vmatpush1.bf16.msra.mxu0 0
      %270 = vmatprep.mubr.bf16.mxu0 0
      %271 = vmatmul.mubr.bf16.gmra.mrb[0].mxu0 %v232
      %v272 = vpop.f32.mrb[0].mxu0
      %v273 = vadd.f32 0.0, %v272
      %v274 = vpop.f32.mrb[0].mxu0
      %v275 = vpop.f32.mrb[0].mxu0
      %v276 = vpop.f32.mrb[0].mxu0
      %277 = vdwg.mxu0
      %278 = vrot.lane.b32.xlu0 %v158, 112
      %v279 = vpop.permute.xlu0 %278
      %280 = vrot.lane.b32.xlu0 %v158, 80
      %v281 = vpop.permute.xlu0 %280
      %v283 = vsel %vm161, %v279, 0
      %v286 = vsel %vm161, %v281, 0
      %288 = vmatprep.subr.bf16.mxu0 0
      %289 = vmatpush1.bf16.xpose.msra.mxu0 %v286
      %290 = vmatprep.subr.bf16.mxu0 0
      %291 = vmatpush1.bf16.xpose.msra.mxu0 0
      %292 = vmatprep.subr.bf16.mxu0 0
      %293 = vmatpush1.bf16.xpose.msra.mxu0 0
      %294 = vmatprep.subr.bf16.mxu0 0
      %295 = vmatpush1.bf16.xpose.msra.mxu0 0
      %296 = vmatprep.subr.bf16.mxu0 0
      %297 = vmatpush1.bf16.xpose.msra.mxu0 0
      %298 = vmatprep.subr.bf16.mxu0 0
      %299 = vmatpush1.bf16.xpose.msra.mxu0 0
      %300 = vmatprep.subr.bf16.mxu0 0
      %301 = vmatpush1.bf16.xpose.msra.mxu0 0
      %302 = vmatprep.subr.bf16.mxu0 0
      %303 = vmatpush1.bf16.xpose.msra.mxu0 0
      %304 = vmatprep.subr.bf16.mxu0 0
      %305 = vmatpush1.bf16.xpose.msra.mxu0 0
      %306 = vmatprep.subr.bf16.mxu0 0
      %307 = vmatpush1.bf16.xpose.msra.mxu0 0
      %308 = vmatprep.subr.bf16.mxu0 0
      %309 = vmatpush1.bf16.xpose.msra.mxu0 0
      %310 = vmatprep.subr.bf16.mxu0 0
      %311 = vmatpush1.bf16.xpose.msra.mxu0 0
      %312 = vmatprep.subr.bf16.mxu0 0
      %313 = vmatpush1.bf16.xpose.msra.mxu0 0
      %314 = vmatprep.subr.bf16.mxu0 0
      %315 = vmatpush1.bf16.xpose.msra.mxu0 0
      %316 = vmatprep.subr.bf16.mxu0 0
      %317 = vmatpush1.bf16.xpose.msra.mxu0 0
      %318 = vmatprep.subr.bf16.mxu0 0
      %319 = vmatpush1.bf16.xpose.msra.mxu0 0
      %320 = vmatprep.mubr.bf16.mxu0 0
      %321 = vmatmul.mubr.bf16.gmra.mrb[0].mxu0 %v283
      %v322 = vpop.f32.mrb[0].mxu0
      %v323 = vadd.f32 0.0, %v322
      %v324 = vpop.f32.mrb[0].mxu0
      %v325 = vpop.f32.mrb[0].mxu0
      %v326 = vpop.f32.mrb[0].mxu0
      %327 = vdwg.mxu0
      %v328 = vmul.f32 %v323, 0.25
      %v329 = vadd.f32 %v328, %v213
      %v330 = vsel %vm216, %v329, -inf
      %331 = vmax.xlane.f32.xlu0 %v330
      %v332 = vpop.xlane.xlu0 %331
      %v333 = vsub.f32 %v329, %v332
      %v334 = vmul.f32 %v333, 1.442695
      %v335 = vpow.pop %v334
      %v336 = vsel %vm216, %v335, 0.0
      %337 = vadd.xlane.f32.xlu0 %v336
      %v338 = vpop.xlane.xlu0 %337
      %v339 = vrcp.pop %v338
      %v340 = vmul.f32 %v335, %v339
      %v341 = vpack.c.bf16 %v340, %v340
      %342 = vrot.lane.b32.xlu0 %v158, 48
      %v343 = vpop.permute.xlu0 %342
      %v345 = vsel %vm216, %v341, 0
      %v348 = vsel %vm234, %v343, 0
      %350 = vmatprep.subr.bf16.mxu0 0
      %351 = vmatpush1.bf16.msra.mxu0 %v348
      %352 = vmatprep.subr.bf16.mxu0 0
      %353 = vmatpush1.bf16.msra.mxu0 0
      %354 = vmatprep.subr.bf16.mxu0 0
      %355 = vmatpush1.bf16.msra.mxu0 0
      %356 = vmatprep.subr.bf16.mxu0 0
      %357 = vmatpush1.bf16.msra.mxu0 0
      %358 = vmatprep.subr.bf16.mxu0 0
      %359 = vmatpush1.bf16.msra.mxu0 0
      %360 = vmatprep.subr.bf16.mxu0 0
      %361 = vmatpush1.bf16.msra.mxu0 0
      %362 = vmatprep.subr.bf16.mxu0 0
      %363 = vmatpush1.bf16.msra.mxu0 0
      %364 = vmatprep.subr.bf16.mxu0 0
      %365 = vmatpush1.bf16.msra.mxu0 0
      %366 = vmatprep.subr.bf16.mxu0 0
      %367 = vmatpush1.bf16.msra.mxu0 0
      %368 = vmatprep.subr.bf16.mxu0 0
      %369 = vmatpush1.bf16.msra.mxu0 0
      %370 = vmatprep.subr.bf16.mxu0 0
      %371 = vmatpush1.bf16.msra.mxu0 0
      %372 = vmatprep.subr.bf16.mxu0 0
      %373 = vmatpush1.bf16.msra.mxu0 0
      %374 = vmatprep.subr.bf16.mxu0 0
      %375 = vmatpush1.bf16.msra.mxu0 0
      %376 = vmatprep.subr.bf16.mxu0 0
      %377 = vmatpush1.bf16.msra.mxu0 0
      %378 = vmatprep.subr.bf16.mxu0 0
      %379 = vmatpush1.bf16.msra.mxu0 0
      %380 = vmatprep.subr.bf16.mxu0 0
      %381 = vmatpush1.bf16.msra.mxu0 0
      %382 = vmatprep.mubr.bf16.mxu0 0
      %383 = vmatmul.mubr.bf16.gmra.mrb[0].mxu0 %v345
      %v384 = vpop.f32.mrb[0].mxu0
      %v385 = vadd.f32 0.0, %v384
      %v386 = vpop.f32.mrb[0].mxu0
      %v387 = vpop.f32.mrb[0].mxu0
      %v388 = vpop.f32.mrb[0].mxu0
      %389 = vdwg.mxu0
      %391 = vrot.lane.b32.xlu0 %v385, 16
      %v392 = vpop.permute.xlu0 %391
      %v394 = vsel %vm161, %v273, %v392
      %v395 = vpack.c.bf16 %v394, %v394
      %vm396 = vcmask 257024
      %397 = vst.msk [vmem:[%s152] sm:$0xf] %vm396, %v395
      %p398 = scmp.lt.s32.totalorder %s13, 1
      %s399 = scalar_select %p398, %s13, 1
      %s400 = smul.addr %s399, 4
      %s401 = scalar_lea.vmem %s2, %s400
      // Predicated region
      $region29: #{trafica_pretrain_forward.15} parent=27 // pred_check
        %p402 = pneg %p83
      $region30: #{trafica_pretrain_forward.15} parent=27 // pred_check_branch
        %404 = sbr.rel (%p402) target = $region32
      $region31: #{trafica_pretrain_forward.15} parent=27 // pred_region
        _
      $region32: #{trafica_pretrain_forward.15} parent=27 // pred_fallthru
        _
    $region28: #{trafica_pretrain_forward.15} parent=5 // pred_fallthru
      _
    %p405 = scmp.le.s32.totalorder 2, %s8
    // Predicated region
    $region33: #{trafica_pretrain_forward.15} parent=5 // pred_check
      %p406 = pneg %p405
    $region34: #{trafica_pretrain_forward.15} parent=5 // pred_check_branch
      %408 = sbr.rel (%p406) target = $region36
    $region35: #{trafica_pretrain_forward.15} parent=5 // pred_region
      %s409 = ssub.s32 %s8, 2
      // Predicated region
      $region37: #{trafica_pretrain_forward.15} parent=35 // pred_check
        %p410 = pneg %p89
      $region38: #{trafica_pretrain_forward.15} parent=35 // pred_check_branch
        %412 = sbr.rel (%p410) target = $region40
      $region39: #{trafica_pretrain_forward.15} parent=35 // pred_region
        %p413 = scmp.lt.s32.totalorder %s14, 1
        %s414 = scalar_select %p413, %s14, 1
        %s415 = smul.addr %s414, 4
        %s416 = scalar_lea.vmem %s2, %s415
      $region40: #{trafica_pretrain_forward.15} parent=35 // pred_fallthru
        _
    $region36: #{trafica_pretrain_forward.15} parent=5 // pred_fallthru
      _
  $region6: #{trafica_pretrain_forward.15} parent=0 // loop_footer
    %s12 = sadd.s32 1, %s8
  $region7: #{trafica_pretrain_forward.15} parent=0 // loop_footer_branch
    %7 = sbr.rel target = $region3
  $region8: #{trafica_pretrain_forward.15} parent=0 // loop_exit
    _

// kernel: trafica_pretrain_forward.17
$region0: #{trafica_pretrain_forward.17}
  #allocation0 [shape = 'u32[]', space=smem, size = 0x4, offset = 0x4, fixed_abs, tag = 'smem constant byte address 0x4 - core index']
  #allocation1 [shape = 'u32[144,128]{1,0:T(1,128)}', space=vmem, size = 0x12000, scoped, tag = 'internal scratch']
  #allocation2 [shape = 'f32[16,64]{1,0:T(8,128)}', space=vmem, size = 0x2000, scoped, tag = 'scratch operand']
  %s0 = inlined_call_operand.vmem [shape: bf16[16,32], index: 0, kind: input, shape index: {}]
  %s1 = inlined_call_operand.vmem [shape: bf16[32,64], index: 1, kind: input, shape index: {}]
  %s2 = inlined_call_operand.vmem [shape: f32[1,64], index: 2, kind: input, shape index: {}]
  %s3 = inlined_call_operand.vmem [shape: bf16[16,64], index: 3, kind: output, shape index: {}]
  %s4 = sld [smem:[#allocation0]]
  $region30: #{trafica_pretrain_forward.17} parent=0
    _
  %s6 = ssub.s32 1, %s4
  %s7 = scalar_select 0, %s6, %s4
  // Predicated region
  $region2: #{trafica_pretrain_forward.17} parent=0 // pred_check
    _
  $region3: #{trafica_pretrain_forward.17} parent=0 // pred_check_branch
    %9 = sbr.rel (0) target = $region5
  $region4: #{trafica_pretrain_forward.17} parent=0 // pred_region
    _
  $region5: #{trafica_pretrain_forward.17} parent=0 // pred_fallthru
    _
  // Predicated region
  $region6: #{trafica_pretrain_forward.17} parent=0 // pred_check
    _
  $region7: #{trafica_pretrain_forward.17} parent=0 // pred_check_branch
    %11 = sbr.rel (0) target = $region9
  $region8: #{trafica_pretrain_forward.17} parent=0 // pred_region
    _
  $region9: #{trafica_pretrain_forward.17} parent=0 // pred_fallthru
    _
  // Predicated region
  $region10: #{trafica_pretrain_forward.17} parent=0 // pred_check
    _
  $region11: #{trafica_pretrain_forward.17} parent=0 // pred_check_branch
    %13 = sbr.rel (0) target = $region13
  $region12: #{trafica_pretrain_forward.17} parent=0 // pred_region
    _
  $region13: #{trafica_pretrain_forward.17} parent=0 // pred_fallthru
    _
  %p15 = scmp.eq.s32.totalorder 0, 0
  // Predicated region
  $region14: #{trafica_pretrain_forward.17} parent=0 // pred_check
    %p16 = pneg %p15
  $region15: #{trafica_pretrain_forward.17} parent=0 // pred_check_branch
    %18 = sbr.rel (%p16) target = $region17
  $region16: #{trafica_pretrain_forward.17} parent=0 // pred_region
    %vm19 = vcmask 523264
    %20 = vst.msk [vmem:[#allocation2] sm:$0xff] %vm19, 0.0
    %21 = vst.msk [vmem:[#allocation2 + $0x8] sm:$0xff] %vm19, 0.0
  $region17: #{trafica_pretrain_forward.17} parent=0 // pred_fallthru
    _
  %v22 = vld [vmem:[#allocation2] sm:$0xff]
  %v23 = vld [vmem:[#allocation2 + $0x8] sm:$0xff]
  %v24 = vld [vmem:[%s0] sm:$0xf]
  %v25 = vld [vmem:[%s0 + $0x4] sm:$0xf]
  %v26 = vld [vmem:[%s1] sm:$0xf]
  %v27 = vld [vmem:[%s1 + $0x4] sm:$0xf]
  %v28 = vld [vmem:[%s1 + $0x8] sm:$0xf]
  %v29 = vld [vmem:[%s1 + $0xc] sm:$0xf]
  %v32 = vunpack.c.l.b16 %v24
  %v33 = vunpack.c.l.b16 %v25
  %v34 = vpack.c.b16 %v33, %v32
  %v39 = vunpack.c.l.b16 %v26
  %v40 = vunpack.c.l.b16 %v27
  %v41 = vunpack.c.l.b16 %v28
  %v42 = vunpack.c.l.b16 %v29
  %v43 = vpack.c.b16 %v40, %v39
  %v44 = vpack.c.b16 %v42, %v41
  %vm47 = vcmask 261120
  %v49 = vsel %vm47, %v34, 0
  %51 = vmatprep.subr.bf16.mxu0 0
  %52 = vmatpush1.bf16.msra.mxu0 %v43
  %53 = vmatprep.subr.bf16.mxu0 0
  %54 = vmatpush1.bf16.msra.mxu0 %v44
  %55 = vmatprep.subr.bf16.mxu0 0
  %56 = vmatpush1.bf16.msra.mxu0 0
  %57 = vmatprep.subr.bf16.mxu0 0
  %58 = vmatpush1.bf16.msra.mxu0 0
  %59 = vmatprep.subr.bf16.mxu0 0
  %60 = vmatpush1.bf16.msra.mxu0 0
  %61 = vmatprep.subr.bf16.mxu0 0
  %62 = vmatpush1.bf16.msra.mxu0 0
  %63 = vmatprep.subr.bf16.mxu0 0
  %64 = vmatpush1.bf16.msra.mxu0 0
  %65 = vmatprep.subr.bf16.mxu0 0
  %66 = vmatpush1.bf16.msra.mxu0 0
  %67 = vmatprep.subr.bf16.mxu0 0
  %68 = vmatpush1.bf16.msra.mxu0 0
  %69 = vmatprep.subr.bf16.mxu0 0
  %70 = vmatpush1.bf16.msra.mxu0 0
  %71 = vmatprep.subr.bf16.mxu0 0
  %72 = vmatpush1.bf16.msra.mxu0 0
  %73 = vmatprep.subr.bf16.mxu0 0
  %74 = vmatpush1.bf16.msra.mxu0 0
  %75 = vmatprep.subr.bf16.mxu0 0
  %76 = vmatpush1.bf16.msra.mxu0 0
  %77 = vmatprep.subr.bf16.mxu0 0
  %78 = vmatpush1.bf16.msra.mxu0 0
  %79 = vmatprep.subr.bf16.mxu0 0
  %80 = vmatpush1.bf16.msra.mxu0 0
  %81 = vmatprep.subr.bf16.mxu0 0
  %82 = vmatpush1.bf16.msra.mxu0 0
  %83 = vmatprep.mubr.bf16.mxu0 0
  %84 = vmatmul.mubr.bf16.gmra.mrb[0].mxu0 %v49
  %v85 = vpop.f32.mrb[0].mxu0
  %v86 = vadd.f32 0.0, %v85
  %v87 = vpop.f32.mrb[0].mxu0
  %v88 = vpop.f32.mrb[0].mxu0
  %v89 = vadd.f32 0.0, %v88
  %v90 = vpop.f32.mrb[0].mxu0
  %91 = vdwg.mxu0
  %v92 = vadd.f32 %v22, %v86
  %v93 = vadd.f32 %v23, %v89
  %vm94 = vcmask 523264
  %95 = vst.msk [vmem:[#allocation2] sm:$0xff] %vm94, %v92
  %96 = vst.msk [vmem:[#allocation2 + $0x8] sm:$0xff] %vm94, %v93
  // Predicated region
  $region18: #{trafica_pretrain_forward.17} parent=0 // pred_check
    %p97 = pneg %p15
  $region19: #{trafica_pretrain_forward.17} parent=0 // pred_check_branch
    %99 = sbr.rel (%p97) target = $region21
  $region20: #{trafica_pretrain_forward.17} parent=0 // pred_region
    %v100 = vld [vmem:[#allocation2] sm:$0xff]
    %v101 = vld [vmem:[#allocation2 + $0x8] sm:$0xff]
    %v102 = vld [vmem:[%s2] sm:$0x1]
    %v104 = vlaneseq
    %v105 = vshrl.u32 %v104, 7
    %v106 = vsub.s32 0, %v105
    %v107 = vrot.slane %v102, %v106
    %v109 = vadd.f32 %v100, %v107
    %v110 = vadd.f32 %v101, %v107
    %v111 = vmul.f32 %v109, 0.5
    %v112 = vmul.f32 %v110, 0.5
    %v113 = vmul.f32 %v109, 0.70710677
    %v114 = vmul.f32 %v110, 0.70710677
    %v115 = vand.u32 2147483647, %v113
    %v116 = vand.u32 2147483647, %v114
    %v117 = vmul.f32 %v115, 0.3275911
    %v118 = vmul.f32 %v116, 0.3275911
    %v119 = vadd.f32 %v117, 1.0
    %v120 = vadd.f32 %v118, 1.0
    %v121 = vrcp.pop %v119
    %v122 = vmul.f32 1.0, %v121
    %v123 = vrcp.pop %v120
    %v124 = vmul.f32 1.0, %v123
    %v125 = vmul.f32 %v122, 1.0614054
    %v126 = vmul.f32 %v124, 1.0614054
    %v127 = vadd.f32 %v125, -1.4531521
    %v128 = vadd.f32 %v126, -1.4531521
    %v129 = vmul.f32 %v127, %v122
    %v130 = vmul.f32 %v128, %v124
    %v131 = vadd.f32 %v129, 1.4214138
    %v132 = vadd.f32 %v130, 1.4214138
    %v133 = vmul.f32 %v131, %v122
    %v134 = vmul.f32 %v132, %v124
    %v135 = vadd.f32 %v133, -0.28449672
    %v136 = vadd.f32 %v134, -0.28449672
    %v137 = vmul.f32 %v135, %v122
    %v138 = vmul.f32 %v136, %v124
    %v139 = vadd.f32 %v137, 0.2548296
    %v140 = vadd.f32 %v138, 0.2548296
    %v141 = vmul.f32 %v139, %v122
    %v142 = vmul.f32 %v140, %v124
    %v143 = vsub.f32 0.0, %v115
    %v144 = vsub.f32 0.0, %v116
    %v145 = vmul.f32 %v143, %v115
    %v146 = vmul.f32 %v144, %v116
    %v147 = vmul.f32 %v145, 1.442695
    %v148 = vpow.pop %v147
    %v149 = vmul.f32 %v146, 1.442695
    %v150 = vpow.pop %v149
    %v151 = vmul.f32 %v141, %v148
    %v152 = vmul.f32 %v142, %v150
    %v153 = vsub.f32 1.0, %v151
    %v154 = vsub.f32 1.0, %v152
    %vm155 = vcmp.ge.f32.partialorder %v113, 0.0
    %vm156 = vcmp.ge.f32.partialorder %v114, 0.0
    %v157 = vsub.f32 0.0, %v153
    %v158 = vsub.f32 0.0, %v154
    %v159 = vsel %vm155, %v153, %v157
    %v160 = vsel %vm156, %v154, %v158
    %v161 = vadd.f32 %v159, 1.0
    %v162 = vadd.f32 %v160, 1.0
    %v163 = vmul.f32 %v111, %v161
    %v164 = vmul.f32 %v112, %v162
    %v165 = vpack.c.bf16 %v164, %v163
    %v167 = vunpack.c.l.b16 %v165
    %v168 = vunpack.c.h.b16 %v165
    %v169 = vpack.c.b16 %v167, %v167
    %v170 = vpack.c.b16 %v168, %v168
    %vm173 = vcmask 519168
    %174 = vst.msk [vmem:[%s3] sm:$0xf] %vm173, %v169
    %175 = vst.msk [vmem:[%s3 + $0x4] sm:$0xf] %vm173, %v170
  $region21: #{trafica_pretrain_forward.17} parent=0 // pred_fallthru
    _
  // Predicated region
  $region22: #{trafica_pretrain_forward.17} parent=0 // pred_check
    _
  $region23: #{trafica_pretrain_forward.17} parent=0 // pred_check_branch
    %177 = sbr.rel (0) target = $region25
  $region24: #{trafica_pretrain_forward.17} parent=0 // pred_region
    _
  $region25: #{trafica_pretrain_forward.17} parent=0 // pred_fallthru
    _
  // Predicated region
  $region26: #{trafica_pretrain_forward.17} parent=0 // pred_check
    _
  $region27: #{trafica_pretrain_forward.17} parent=0 // pred_check_branch
    %179 = sbr.rel (0) target = $region29
  $region28: #{trafica_pretrain_forward.17} parent=0 // pred_region
    _
  $region29: #{trafica_pretrain_forward.17} parent=0 // pred_fallthru
    _

// kernel: trafica_pretrain_forward.18
$region0: #{trafica_pretrain_forward.18}
  #allocation0 [shape = 'u32[]', space=smem, size = 0x4, offset = 0x4, fixed_abs, tag = 'smem constant byte address 0x4 - core index']
  #allocation1 [shape = 'u32[144,128]{1,0:T(1,128)}', space=vmem, size = 0x12000, scoped, tag = 'internal scratch']
  #allocation2 [shape = 'f32[16,32]{1,0:T(8,128)}', space=vmem, size = 0x2000, scoped, tag = 'scratch operand']
  %s0 = inlined_call_operand.vmem [shape: bf16[16,64], index: 0, kind: input, shape index: {}]
  %s1 = inlined_call_operand.vmem [shape: bf16[64,32], index: 1, kind: input, shape index: {}]
  %s2 = inlined_call_operand.vmem [shape: f32[1,32], index: 2, kind: input, shape index: {}]
  %s3 = inlined_call_operand.vmem [shape: f32[16,32], index: 3, kind: input, shape index: {}]
  %s4 = inlined_call_operand.vmem [shape: f32[1,32], index: 4, kind: input, shape index: {}]
  %s5 = inlined_call_operand.vmem [shape: f32[1,32], index: 5, kind: input, shape index: {}]
  %s6 = inlined_call_operand.vmem [shape: f32[16,32], index: 6, kind: output, shape index: {}]
  %s7 = sld [smem:[#allocation0]]
  $region42: #{trafica_pretrain_forward.18} parent=0
    _
  %s9 = ssub.s32 1, %s7
  %s10 = scalar_select 0, %s9, %s7
  // Predicated region
  $region2: #{trafica_pretrain_forward.18} parent=0 // pred_check
    _
  $region3: #{trafica_pretrain_forward.18} parent=0 // pred_check_branch
    %12 = sbr.rel (0) target = $region5
  $region4: #{trafica_pretrain_forward.18} parent=0 // pred_region
    _
  $region5: #{trafica_pretrain_forward.18} parent=0 // pred_fallthru
    _
  // Predicated region
  $region6: #{trafica_pretrain_forward.18} parent=0 // pred_check
    _
  $region7: #{trafica_pretrain_forward.18} parent=0 // pred_check_branch
    %14 = sbr.rel (0) target = $region9
  $region8: #{trafica_pretrain_forward.18} parent=0 // pred_region
    _
  $region9: #{trafica_pretrain_forward.18} parent=0 // pred_fallthru
    _
  // Predicated region
  $region10: #{trafica_pretrain_forward.18} parent=0 // pred_check
    _
  $region11: #{trafica_pretrain_forward.18} parent=0 // pred_check_branch
    %16 = sbr.rel (0) target = $region13
  $region12: #{trafica_pretrain_forward.18} parent=0 // pred_region
    _
  $region13: #{trafica_pretrain_forward.18} parent=0 // pred_fallthru
    _
  // Predicated region
  $region14: #{trafica_pretrain_forward.18} parent=0 // pred_check
    _
  $region15: #{trafica_pretrain_forward.18} parent=0 // pred_check_branch
    %18 = sbr.rel (0) target = $region17
  $region16: #{trafica_pretrain_forward.18} parent=0 // pred_region
    _
  $region17: #{trafica_pretrain_forward.18} parent=0 // pred_fallthru
    _
  // Predicated region
  $region18: #{trafica_pretrain_forward.18} parent=0 // pred_check
    _
  $region19: #{trafica_pretrain_forward.18} parent=0 // pred_check_branch
    %20 = sbr.rel (0) target = $region21
  $region20: #{trafica_pretrain_forward.18} parent=0 // pred_region
    _
  $region21: #{trafica_pretrain_forward.18} parent=0 // pred_fallthru
    _
  // Predicated region
  $region22: #{trafica_pretrain_forward.18} parent=0 // pred_check
    _
  $region23: #{trafica_pretrain_forward.18} parent=0 // pred_check_branch
    %22 = sbr.rel (0) target = $region25
  $region24: #{trafica_pretrain_forward.18} parent=0 // pred_region
    _
  $region25: #{trafica_pretrain_forward.18} parent=0 // pred_fallthru
    _
  %p24 = scmp.eq.s32.totalorder 0, 0
  // Predicated region
  $region26: #{trafica_pretrain_forward.18} parent=0 // pred_check
    %p25 = pneg %p24
  $region27: #{trafica_pretrain_forward.18} parent=0 // pred_check_branch
    %27 = sbr.rel (%p25) target = $region29
  $region28: #{trafica_pretrain_forward.18} parent=0 // pred_region
    %vm28 = vcmask 261120
    %29 = vst.msk [vmem:[#allocation2] sm:$0xff] %vm28, 0.0
    %30 = vst.msk [vmem:[#allocation2 + $0x8] sm:$0xff] %vm28, 0.0
  $region29: #{trafica_pretrain_forward.18} parent=0 // pred_fallthru
    _
  %v31 = vld [vmem:[#allocation2] sm:$0xff]
  %v32 = vld [vmem:[#allocation2 + $0x8] sm:$0xff]
  %v33 = vld [vmem:[%s0] sm:$0xf]
  %v34 = vld [vmem:[%s0 + $0x4] sm:$0xf]
  %v35 = vld [vmem:[%s1] sm:$0xf]
  %v36 = vld [vmem:[%s1 + $0x4] sm:$0xf]
  %v37 = vld [vmem:[%s1 + $0x8] sm:$0xf]
  %v38 = vld [vmem:[%s1 + $0xc] sm:$0xf]
  %v39 = vld [vmem:[%s1 + $0x10] sm:$0xf]
  %v40 = vld [vmem:[%s1 + $0x14] sm:$0xf]
  %v41 = vld [vmem:[%s1 + $0x18] sm:$0xf]
  %v42 = vld [vmem:[%s1 + $0x1c] sm:$0xf]
  %v45 = vunpack.c.l.b16 %v33
  %v46 = vunpack.c.l.b16 %v34
  %v47 = vpack.c.b16 %v46, %v45
  %v56 = vunpack.c.l.b16 %v35
  %v57 = vunpack.c.l.b16 %v36
  %v58 = vunpack.c.l.b16 %v37
  %v59 = vunpack.c.l.b16 %v38
  %v60 = vunpack.c.l.b16 %v39
  %v61 = vunpack.c.l.b16 %v40
  %v62 = vunpack.c.l.b16 %v41
  %v63 = vunpack.c.l.b16 %v42
  %v64 = vpack.c.b16 %v57, %v56
  %v65 = vpack.c.b16 %v59, %v58
  %v66 = vpack.c.b16 %v61, %v60
  %v67 = vpack.c.b16 %v63, %v62
  %vm72 = vcmask 523264
  %v74 = vsel %vm72, %v47, 0
  %76 = vmatprep.subr.bf16.mxu0 0
  %77 = vmatpush1.bf16.msra.mxu0 %v64
  %78 = vmatprep.subr.bf16.mxu0 0
  %79 = vmatpush1.bf16.msra.mxu0 %v65
  %80 = vmatprep.subr.bf16.mxu0 0
  %81 = vmatpush1.bf16.msra.mxu0 %v66
  %82 = vmatprep.subr.bf16.mxu0 0
  %83 = vmatpush1.bf16.msra.mxu0 %v67
  %84 = vmatprep.subr.bf16.mxu0 0
  %85 = vmatpush1.bf16.msra.mxu0 0
  %86 = vmatprep.subr.bf16.mxu0 0
  %87 = vmatpush1.bf16.msra.mxu0 0
  %88 = vmatprep.subr.bf16.mxu0 0
  %89 = vmatpush1.bf16.msra.mxu0 0
  %90 = vmatprep.subr.bf16.mxu0 0
  %91 = vmatpush1.bf16.msra.mxu0 0
  %92 = vmatprep.subr.bf16.mxu0 0
  %93 = vmatpush1.bf16.msra.mxu0 0
  %94 = vmatprep.subr.bf16.mxu0 0
  %95 = vmatpush1.bf16.msra.mxu0 0
  %96 = vmatprep.subr.bf16.mxu0 0
  %97 = vmatpush1.bf16.msra.mxu0 0
  %98 = vmatprep.subr.bf16.mxu0 0
  %99 = vmatpush1.bf16.msra.mxu0 0
  %100 = vmatprep.subr.bf16.mxu0 0
  %101 = vmatpush1.bf16.msra.mxu0 0
  %102 = vmatprep.subr.bf16.mxu0 0
  %103 = vmatpush1.bf16.msra.mxu0 0
  %104 = vmatprep.subr.bf16.mxu0 0
  %105 = vmatpush1.bf16.msra.mxu0 0
  %106 = vmatprep.subr.bf16.mxu0 0
  %107 = vmatpush1.bf16.msra.mxu0 0
  %108 = vmatprep.mubr.bf16.mxu0 0
  %109 = vmatmul.mubr.bf16.gmra.mrb[0].mxu0 %v74
  %v110 = vpop.f32.mrb[0].mxu0
  %v111 = vadd.f32 0.0, %v110
  %v112 = vpop.f32.mrb[0].mxu0
  %v113 = vpop.f32.mrb[0].mxu0
  %v114 = vadd.f32 0.0, %v113
  %v115 = vpop.f32.mrb[0].mxu0
  %116 = vdwg.mxu0
  %v117 = vadd.f32 %v31, %v111
  %v118 = vadd.f32 %v32, %v114
  %vm119 = vcmask 261120
  %120 = vst.msk [vmem:[#allocation2] sm:$0xff] %vm119, %v117
  %121 = vst.msk [vmem:[#allocation2 + $0x8] sm:$0xff] %vm119, %v118
  // Predicated region
  $region30: #{trafica_pretrain_forward.18} parent=0 // pred_check
    %p122 = pneg %p24
  $region31: #{trafica_pretrain_forward.18} parent=0 // pred_check_branch
    %124 = sbr.rel (%p122) target = $region33
  $region32: #{trafica_pretrain_forward.18} parent=0 // pred_region
    %v125 = vld [vmem:[#allocation2] sm:$0xff]
    %v126 = vld [vmem:[#allocation2 + $0x8] sm:$0xff]
    %v127 = vld [vmem:[%s2] sm:$0x1]
    %v129 = vlaneseq
    %v130 = vshrl.u32 %v129, 7
    %v131 = vsub.s32 0, %v130
    %v132 = vrot.slane %v127, %v131
    %v134 = vadd.f32 %v125, %v132
    %v135 = vadd.f32 %v126, %v132
    %v136 = vld [vmem:[%s3] sm:$0xff]
    %v137 = vld [vmem:[%s3 + $0x8] sm:$0xff]
    %v138 = vadd.f32 %v134, %v136
    %v139 = vadd.f32 %v135, %v137
    %v140 = vld [vmem:[%s4] sm:$0x1]
    %v141 = vld [vmem:[%s5] sm:$0x1]
    %v142 = vsel %vm119, %v138, 0.0
    %143 = vadd.xlane.f32.xlu0 %v142
    %v144 = vpop.xlane.xlu0 %143
    %v145 = vsel %vm119, %v139, 0.0
    %146 = vadd.xlane.f32.xlu0 %v145
    %v147 = vpop.xlane.xlu0 %146
    %v148 = vrcp.pop 32.0
    %v149 = vmul.f32 %v144, %v148
    %v150 = vmul.f32 %v147, %v148
    %v151 = vsub.f32 %v138, %v149
    %v152 = vsub.f32 %v139, %v150
    %v153 = vmul.f32 %v151, %v151
    %v154 = vmul.f32 %v152, %v152
    %v155 = vsel %vm119, %v153, 0.0
    %156 = vadd.xlane.f32.xlu0 %v155
    %v157 = vpop.xlane.xlu0 %156
    %v158 = vsel %vm119, %v154, 0.0
    %159 = vadd.xlane.f32.xlu0 %v158
    %v160 = vpop.xlane.xlu0 %159
    %v161 = vmul.f32 %v157, %v148
    %v162 = vmul.f32 %v160, %v148
    %v163 = vadd.f32 %v161, 1e-12
    %v164 = vadd.f32 %v162, 1e-12
    %v165 = vrsqrt.pop %v163
    %v166 = vrsqrt.pop %v164
    %v167 = vmul.f32 %v151, %v165
    %v168 = vmul.f32 %v152, %v166
    %v170 = vlaneseq
    %v171 = vshrl.u32 %v170, 7
    %v172 = vsub.s32 0, %v171
    %v173 = vrot.slane %v140, %v172
    %v175 = vmul.f32 %v167, %v173
    %v176 = vmul.f32 %v168, %v173
    %v178 = vlaneseq
    %v179 = vshrl.u32 %v178, 7
    %v180 = vsub.s32 0, %v179
    %v181 = vrot.slane %v141, %v180
    %v183 = vadd.f32 %v175, %v181
    %v184 = vadd.f32 %v176, %v181
    %185 = vst.msk [vmem:[%s6] sm:$0xff] %vm119, %v183
    %186 = vst.msk [vmem:[%s6 + $0x8] sm:$0xff] %vm119, %v184
  $region33: #{trafica_pretrain_forward.18} parent=0 // pred_fallthru
    _
  // Predicated region
  $region34: #{trafica_pretrain_forward.18} parent=0 // pred_check
    _
  $region35: #{trafica_pretrain_forward.18} parent=0 // pred_check_branch
    %188 = sbr.rel (0) target = $region37
  $region36: #{trafica_pretrain_forward.18} parent=0 // pred_region
    _
  $region37: #{trafica_pretrain_forward.18} parent=0 // pred_fallthru
    _
  // Predicated region
  $region38: #{trafica_pretrain_forward.18} parent=0 // pred_check
    _
  $region39: #{trafica_pretrain_forward.18} parent=0 // pred_check_branch
    %190 = sbr.rel (0) target = $region41
  $region40: #{trafica_pretrain_forward.18} parent=0 // pred_region
    _
  $region41: #{trafica_pretrain_forward.18} parent=0 // pred_fallthru
    _

// kernel: trafica_pretrain_forward.24
$region0: #{trafica_pretrain_forward.24}
  #allocation0 [shape = 'u32[]', space=smem, size = 0x4, offset = 0x4, fixed_abs, tag = 'smem constant byte address 0x4 - core index']
  #allocation1 [shape = 'u32[144,128]{1,0:T(1,128)}', space=vmem, size = 0x12000, scoped, tag = 'internal scratch']
  #allocation2 [shape = 'f32[16,32]{1,0:T(8,128)}', space=vmem, size = 0x2000, scoped, tag = 'scratch operand']
  %s0 = inlined_call_operand.vmem [shape: bf16[16,32], index: 0, kind: input, shape index: {}]
  %s1 = inlined_call_operand.vmem [shape: bf16[32,32], index: 1, kind: input, shape index: {}]
  %s2 = inlined_call_operand.vmem [shape: f32[1,32], index: 2, kind: input, shape index: {}]
  %s3 = inlined_call_operand.vmem [shape: f32[1,32], index: 3, kind: input, shape index: {}]
  %s4 = inlined_call_operand.vmem [shape: f32[1,32], index: 4, kind: input, shape index: {}]
  %s5 = inlined_call_operand.vmem [shape: f32[16,32], index: 5, kind: output, shape index: {}]
  %s6 = sld [smem:[#allocation0]]
  $region38: #{trafica_pretrain_forward.24} parent=0
    _
  %s8 = ssub.s32 1, %s6
  %s9 = scalar_select 0, %s8, %s6
  // Predicated region
  $region2: #{trafica_pretrain_forward.24} parent=0 // pred_check
    _
  $region3: #{trafica_pretrain_forward.24} parent=0 // pred_check_branch
    %11 = sbr.rel (0) target = $region5
  $region4: #{trafica_pretrain_forward.24} parent=0 // pred_region
    _
  $region5: #{trafica_pretrain_forward.24} parent=0 // pred_fallthru
    _
  // Predicated region
  $region6: #{trafica_pretrain_forward.24} parent=0 // pred_check
    _
  $region7: #{trafica_pretrain_forward.24} parent=0 // pred_check_branch
    %13 = sbr.rel (0) target = $region9
  $region8: #{trafica_pretrain_forward.24} parent=0 // pred_region
    _
  $region9: #{trafica_pretrain_forward.24} parent=0 // pred_fallthru
    _
  // Predicated region
  $region10: #{trafica_pretrain_forward.24} parent=0 // pred_check
    _
  $region11: #{trafica_pretrain_forward.24} parent=0 // pred_check_branch
    %15 = sbr.rel (0) target = $region13
  $region12: #{trafica_pretrain_forward.24} parent=0 // pred_region
    _
  $region13: #{trafica_pretrain_forward.24} parent=0 // pred_fallthru
    _
  // Predicated region
  $region14: #{trafica_pretrain_forward.24} parent=0 // pred_check
    _
  $region15: #{trafica_pretrain_forward.24} parent=0 // pred_check_branch
    %17 = sbr.rel (0) target = $region17
  $region16: #{trafica_pretrain_forward.24} parent=0 // pred_region
    _
  $region17: #{trafica_pretrain_forward.24} parent=0 // pred_fallthru
    _
  // Predicated region
  $region18: #{trafica_pretrain_forward.24} parent=0 // pred_check
    _
  $region19: #{trafica_pretrain_forward.24} parent=0 // pred_check_branch
    %19 = sbr.rel (0) target = $region21
  $region20: #{trafica_pretrain_forward.24} parent=0 // pred_region
    _
  $region21: #{trafica_pretrain_forward.24} parent=0 // pred_fallthru
    _
  %p21 = scmp.eq.s32.totalorder 0, 0
  // Predicated region
  $region22: #{trafica_pretrain_forward.24} parent=0 // pred_check
    %p22 = pneg %p21
  $region23: #{trafica_pretrain_forward.24} parent=0 // pred_check_branch
    %24 = sbr.rel (%p22) target = $region25
  $region24: #{trafica_pretrain_forward.24} parent=0 // pred_region
    %vm25 = vcmask 261120
    %26 = vst.msk [vmem:[#allocation2] sm:$0xff] %vm25, 0.0
    %27 = vst.msk [vmem:[#allocation2 + $0x8] sm:$0xff] %vm25, 0.0
  $region25: #{trafica_pretrain_forward.24} parent=0 // pred_fallthru
    _
  %v28 = vld [vmem:[#allocation2] sm:$0xff]
  %v29 = vld [vmem:[#allocation2 + $0x8] sm:$0xff]
  %v30 = vld [vmem:[%s0] sm:$0xf]
  %v31 = vld [vmem:[%s0 + $0x4] sm:$0xf]
  %v32 = vld [vmem:[%s1] sm:$0xf]
  %v33 = vld [vmem:[%s1 + $0x4] sm:$0xf]
  %v34 = vld [vmem:[%s1 + $0x8] sm:$0xf]
  %v35 = vld [vmem:[%s1 + $0xc] sm:$0xf]
  %v38 = vunpack.c.l.b16 %v30
  %v39 = vunpack.c.l.b16 %v31
  %v40 = vpack.c.b16 %v39, %v38
  %v45 = vunpack.c.l.b16 %v32
  %v46 = vunpack.c.l.b16 %v33
  %v47 = vunpack.c.l.b16 %v34
  %v48 = vunpack.c.l.b16 %v35
  %v49 = vpack.c.b16 %v46, %v45
  %v50 = vpack.c.b16 %v48, %v47
  %vm53 = vcmask 261120
  %v55 = vsel %vm53, %v40, 0
  %57 = vmatprep.subr.bf16.mxu0 0
  %58 = vmatpush1.bf16.msra.mxu0 %v49
  %59 = vmatprep.subr.bf16.mxu0 0
  %60 = vmatpush1.bf16.msra.mxu0 %v50
  %61 = vmatprep.subr.bf16.mxu0 0
  %62 = vmatpush1.bf16.msra.mxu0 0
  %63 = vmatprep.subr.bf16.mxu0 0
  %64 = vmatpush1.bf16.msra.mxu0 0
  %65 = vmatprep.subr.bf16.mxu0 0
  %66 = vmatpush1.bf16.msra.mxu0 0
  %67 = vmatprep.subr.bf16.mxu0 0
  %68 = vmatpush1.bf16.msra.mxu0 0
  %69 = vmatprep.subr.bf16.mxu0 0
  %70 = vmatpush1.bf16.msra.mxu0 0
  %71 = vmatprep.subr.bf16.mxu0 0
  %72 = vmatpush1.bf16.msra.mxu0 0
  %73 = vmatprep.subr.bf16.mxu0 0
  %74 = vmatpush1.bf16.msra.mxu0 0
  %75 = vmatprep.subr.bf16.mxu0 0
  %76 = vmatpush1.bf16.msra.mxu0 0
  %77 = vmatprep.subr.bf16.mxu0 0
  %78 = vmatpush1.bf16.msra.mxu0 0
  %79 = vmatprep.subr.bf16.mxu0 0
  %80 = vmatpush1.bf16.msra.mxu0 0
  %81 = vmatprep.subr.bf16.mxu0 0
  %82 = vmatpush1.bf16.msra.mxu0 0
  %83 = vmatprep.subr.bf16.mxu0 0
  %84 = vmatpush1.bf16.msra.mxu0 0
  %85 = vmatprep.subr.bf16.mxu0 0
  %86 = vmatpush1.bf16.msra.mxu0 0
  %87 = vmatprep.subr.bf16.mxu0 0
  %88 = vmatpush1.bf16.msra.mxu0 0
  %89 = vmatprep.mubr.bf16.mxu0 0
  %90 = vmatmul.mubr.bf16.gmra.mrb[0].mxu0 %v55
  %v91 = vpop.f32.mrb[0].mxu0
  %v92 = vadd.f32 0.0, %v91
  %v93 = vpop.f32.mrb[0].mxu0
  %v94 = vpop.f32.mrb[0].mxu0
  %v95 = vadd.f32 0.0, %v94
  %v96 = vpop.f32.mrb[0].mxu0
  %97 = vdwg.mxu0
  %v98 = vadd.f32 %v28, %v92
  %v99 = vadd.f32 %v29, %v95
  %100 = vst.msk [vmem:[#allocation2] sm:$0xff] %vm53, %v98
  %101 = vst.msk [vmem:[#allocation2 + $0x8] sm:$0xff] %vm53, %v99
  // Predicated region
  $region26: #{trafica_pretrain_forward.24} parent=0 // pred_check
    %p102 = pneg %p21
  $region27: #{trafica_pretrain_forward.24} parent=0 // pred_check_branch
    %104 = sbr.rel (%p102) target = $region29
  $region28: #{trafica_pretrain_forward.24} parent=0 // pred_region
    %v105 = vld [vmem:[#allocation2] sm:$0xff]
    %v106 = vld [vmem:[#allocation2 + $0x8] sm:$0xff]
    %v107 = vld [vmem:[%s2] sm:$0x1]
    %v109 = vlaneseq
    %v110 = vshrl.u32 %v109, 7
    %v111 = vsub.s32 0, %v110
    %v112 = vrot.slane %v107, %v111
    %v114 = vadd.f32 %v105, %v112
    %v115 = vadd.f32 %v106, %v112
    %v116 = vmul.f32 %v114, 0.5
    %v117 = vmul.f32 %v115, 0.5
    %v118 = vmul.f32 %v114, 0.70710677
    %v119 = vmul.f32 %v115, 0.70710677
    %v120 = vand.u32 2147483647, %v118
    %v121 = vand.u32 2147483647, %v119
    %v122 = vmul.f32 %v120, 0.3275911
    %v123 = vmul.f32 %v121, 0.3275911
    %v124 = vadd.f32 %v122, 1.0
    %v125 = vadd.f32 %v123, 1.0
    %v126 = vrcp.pop %v124
    %v127 = vmul.f32 1.0, %v126
    %v128 = vrcp.pop %v125
    %v129 = vmul.f32 1.0, %v128
    %v130 = vmul.f32 %v127, 1.0614054
    %v131 = vmul.f32 %v129, 1.0614054
    %v132 = vadd.f32 %v130, -1.4531521
    %v133 = vadd.f32 %v131, -1.4531521
    %v134 = vmul.f32 %v132, %v127
    %v135 = vmul.f32 %v133, %v129
    %v136 = vadd.f32 %v134, 1.4214138
    %v137 = vadd.f32 %v135, 1.4214138
    %v138 = vmul.f32 %v136, %v127
    %v139 = vmul.f32 %v137, %v129
    %v140 = vadd.f32 %v138, -0.28449672
    %v141 = vadd.f32 %v139, -0.28449672
    %v142 = vmul.f32 %v140, %v127
    %v143 = vmul.f32 %v141, %v129
    %v144 = vadd.f32 %v142, 0.2548296
    %v145 = vadd.f32 %v143, 0.2548296
    %v146 = vmul.f32 %v144, %v127
    %v147 = vmul.f32 %v145, %v129
    %v148 = vsub.f32 0.0, %v120
    %v149 = vsub.f32 0.0, %v121
    %v150 = vmul.f32 %v148, %v120
    %v151 = vmul.f32 %v149, %v121
    %v152 = vmul.f32 %v150, 1.442695
    %v153 = vpow.pop %v152
    %v154 = vmul.f32 %v151, 1.442695
    %v155 = vpow.pop %v154
    %v156 = vmul.f32 %v146, %v153
    %v157 = vmul.f32 %v147, %v155
    %v158 = vsub.f32 1.0, %v156
    %v159 = vsub.f32 1.0, %v157
    %vm160 = vcmp.ge.f32.partialorder %v118, 0.0
    %vm161 = vcmp.ge.f32.partialorder %v119, 0.0
    %v162 = vsub.f32 0.0, %v158
    %v163 = vsub.f32 0.0, %v159
    %v164 = vsel %vm160, %v158, %v162
    %v165 = vsel %vm161, %v159, %v163
    %v166 = vadd.f32 %v164, 1.0
    %v167 = vadd.f32 %v165, 1.0
    %v168 = vmul.f32 %v116, %v166
    %v169 = vmul.f32 %v117, %v167
    %v170 = vld [vmem:[%s3] sm:$0x1]
    %v171 = vld [vmem:[%s4] sm:$0x1]
    %v172 = vsel %vm53, %v168, 0.0
    %173 = vadd.xlane.f32.xlu0 %v172
    %v174 = vpop.xlane.xlu0 %173
    %v175 = vsel %vm53, %v169, 0.0
    %176 = vadd.xlane.f32.xlu0 %v175
    %v177 = vpop.xlane.xlu0 %176
    %v178 = vrcp.pop 32.0
    %v179 = vmul.f32 %v174, %v178
    %v180 = vmul.f32 %v177, %v178
    %v181 = vsub.f32 %v168, %v179
    %v182 = vsub.f32 %v169, %v180
    %v183 = vmul.f32 %v181, %v181
    %v184 = vmul.f32 %v182, %v182
    %v185 = vsel %vm53, %v183, 0.0
    %186 = vadd.xlane.f32.xlu0 %v185
    %v187 = vpop.xlane.xlu0 %186
    %v188 = vsel %vm53, %v184, 0.0
    %189 = vadd.xlane.f32.xlu0 %v188
    %v190 = vpop.xlane.xlu0 %189
    %v191 = vmul.f32 %v187, %v178
    %v192 = vmul.f32 %v190, %v178
    %v193 = vadd.f32 %v191, 1e-12
    %v194 = vadd.f32 %v192, 1e-12
    %v195 = vrsqrt.pop %v193
    %v196 = vrsqrt.pop %v194
    %v197 = vmul.f32 %v181, %v195
    %v198 = vmul.f32 %v182, %v196
    %v200 = vlaneseq
    %v201 = vshrl.u32 %v200, 7
    %v202 = vsub.s32 0, %v201
    %v203 = vrot.slane %v170, %v202
    %v205 = vmul.f32 %v197, %v203
    %v206 = vmul.f32 %v198, %v203
    %v208 = vlaneseq
    %v209 = vshrl.u32 %v208, 7
    %v210 = vsub.s32 0, %v209
    %v211 = vrot.slane %v171, %v210
    %v213 = vadd.f32 %v205, %v211
    %v214 = vadd.f32 %v206, %v211
    %215 = vst.msk [vmem:[%s5] sm:$0xff] %vm53, %v213
    %216 = vst.msk [vmem:[%s5 + $0x8] sm:$0xff] %vm53, %v214
  $region29: #{trafica_pretrain_forward.24} parent=0 // pred_fallthru
    _
  // Predicated region
  $region30: #{trafica_pretrain_forward.24} parent=0 // pred_check
    _
  $region31: #{trafica_pretrain_forward.24} parent=0 // pred_check_branch
    %218 = sbr.rel (0) target = $region33
  $region32: #{trafica_pretrain_forward.24} parent=0 // pred_region
    _
  $region33: #{trafica_pretrain_forward.24} parent=0 // pred_fallthru
    _
  // Predicated region
  $region34: #{trafica_pretrain_forward.24} parent=0 // pred_check
    _
  $region35: #{trafica_pretrain_forward.24} parent=0 // pred_check_branch
    %220 = sbr.rel (0) target = $region37
  $region36: #{trafica_pretrain_forward.24} parent=0 // pred_region
    _
  $region37: #{trafica_pretrain_forward.24} parent=0 // pred_fallthru
    _

// kernel: trafica_pretrain_forward.25
$region0: #{trafica_pretrain_forward.25}
  #allocation0 [shape = 'u32[]', space=smem, size = 0x4, offset = 0x4, fixed_abs, tag = 'smem constant byte address 0x4 - core index']
  #allocation1 [shape = 'u32[144,128]{1,0:T(1,128)}', space=vmem, size = 0x12000, scoped, tag = 'internal scratch']
  #allocation2 [shape = 'f32[16,128]{1,0:T(8,128)}', space=vmem, size = 0x2000, scoped, tag = 'scratch operand']
  %s0 = inlined_call_operand.vmem [shape: bf16[16,32], index: 0, kind: input, shape index: {}]
  %s1 = inlined_call_operand.vmem [shape: bf16[32,128], index: 1, kind: input, shape index: {}]
  %s2 = inlined_call_operand.vmem [shape: f32[1,128], index: 2, kind: input, shape index: {}]
  %s3 = inlined_call_operand.hbm [shape: f32[16,128], index: 3, kind: output, shape index: {}]
  %s4 = sld [smem:[#allocation0]]
  $region30: #{trafica_pretrain_forward.25} parent=0
    _
  %s6 = ssub.s32 1, %s4
  %s7 = scalar_select 0, %s6, %s4
  $region1: #{trafica_pretrain_forward.25} parent=0
    #allocation3 [shape = 'u8[8192]{0}', space=vmem, size = 0x2000, scoped, tag = 'output window, operand 0, single buffered']
    #allocation4 [shape = 's32[1]{0}', space=sflag, size = 0x4, scoped, tag = 'scoped memory for trafica_pretrain_forward.25']
    %8 = vsyncpa [#allocation4], 0
    // Predicated region
    $region2: #{trafica_pretrain_forward.25} parent=1 // pred_check
      _
    $region3: #{trafica_pretrain_forward.25} parent=1 // pred_check_branch
      %10 = sbr.rel (0) target = $region5
    $region4: #{trafica_pretrain_forward.25} parent=1 // pred_region
      _
    $region5: #{trafica_pretrain_forward.25} parent=1 // pred_fallthru
      _
    // Predicated region
    $region6: #{trafica_pretrain_forward.25} parent=1 // pred_check
      _
    $region7: #{trafica_pretrain_forward.25} parent=1 // pred_check_branch
      %12 = sbr.rel (0) target = $region9
    $region8: #{trafica_pretrain_forward.25} parent=1 // pred_region
      _
    $region9: #{trafica_pretrain_forward.25} parent=1 // pred_fallthru
      _
    // Predicated region
    $region10: #{trafica_pretrain_forward.25} parent=1 // pred_check
      _
    $region11: #{trafica_pretrain_forward.25} parent=1 // pred_check_branch
      %14 = sbr.rel (0) target = $region13
    $region12: #{trafica_pretrain_forward.25} parent=1 // pred_region
      _
    $region13: #{trafica_pretrain_forward.25} parent=1 // pred_fallthru
      _
    %p16 = scmp.eq.s32.totalorder 0, 0
    // Predicated region
    $region14: #{trafica_pretrain_forward.25} parent=1 // pred_check
      %p17 = pneg %p16
    $region15: #{trafica_pretrain_forward.25} parent=1 // pred_check_branch
      %19 = sbr.rel (%p17) target = $region17
    $region16: #{trafica_pretrain_forward.25} parent=1 // pred_region
      %20 = vst [vmem:[#allocation2] sm:$0xff] 0.0
      %21 = vst [vmem:[#allocation2 + $0x8] sm:$0xff] 0.0
    $region17: #{trafica_pretrain_forward.25} parent=1 // pred_fallthru
      _
    %v22 = vld [vmem:[#allocation2] sm:$0xff]
    %v23 = vld [vmem:[#allocation2 + $0x8] sm:$0xff]
    %v24 = vld [vmem:[%s0] sm:$0xf]
    %v25 = vld [vmem:[%s0 + $0x4] sm:$0xf]
    %v26 = vld [vmem:[%s1] sm:$0xf]
    %v27 = vld [vmem:[%s1 + $0x4] sm:$0xf]
    %v28 = vld [vmem:[%s1 + $0x8] sm:$0xf]
    %v29 = vld [vmem:[%s1 + $0xc] sm:$0xf]
    %v32 = vunpack.c.l.b16 %v24
    %v33 = vunpack.c.l.b16 %v25
    %v34 = vpack.c.b16 %v33, %v32
    %v39 = vunpack.c.l.b16 %v26
    %v40 = vunpack.c.l.b16 %v27
    %v41 = vunpack.c.l.b16 %v28
    %v42 = vunpack.c.l.b16 %v29
    %v43 = vpack.c.b16 %v40, %v39
    %v44 = vpack.c.b16 %v42, %v41
    %vm47 = vcmask 261120
    %v49 = vsel %vm47, %v34, 0
    %51 = vmatprep.subr.bf16.mxu0 0
    %52 = vmatpush1.bf16.msra.mxu0 %v43
    %53 = vmatprep.subr.bf16.mxu0 0
    %54 = vmatpush1.bf16.msra.mxu0 %v44
    %55 = vmatprep.subr.bf16.mxu0 0
    %56 = vmatpush1.bf16.msra.mxu0 0
    %57 = vmatprep.subr.bf16.mxu0 0
    %58 = vmatpush1.bf16.msra.mxu0 0
    %59 = vmatprep.subr.bf16.mxu0 0
    %60 = vmatpush1.bf16.msra.mxu0 0
    %61 = vmatprep.subr.bf16.mxu0 0
    %62 = vmatpush1.bf16.msra.mxu0 0
    %63 = vmatprep.subr.bf16.mxu0 0
    %64 = vmatpush1.bf16.msra.mxu0 0
    %65 = vmatprep.subr.bf16.mxu0 0
    %66 = vmatpush1.bf16.msra.mxu0 0
    %67 = vmatprep.subr.bf16.mxu0 0
    %68 = vmatpush1.bf16.msra.mxu0 0
    %69 = vmatprep.subr.bf16.mxu0 0
    %70 = vmatpush1.bf16.msra.mxu0 0
    %71 = vmatprep.subr.bf16.mxu0 0
    %72 = vmatpush1.bf16.msra.mxu0 0
    %73 = vmatprep.subr.bf16.mxu0 0
    %74 = vmatpush1.bf16.msra.mxu0 0
    %75 = vmatprep.subr.bf16.mxu0 0
    %76 = vmatpush1.bf16.msra.mxu0 0
    %77 = vmatprep.subr.bf16.mxu0 0
    %78 = vmatpush1.bf16.msra.mxu0 0
    %79 = vmatprep.subr.bf16.mxu0 0
    %80 = vmatpush1.bf16.msra.mxu0 0
    %81 = vmatprep.subr.bf16.mxu0 0
    %82 = vmatpush1.bf16.msra.mxu0 0
    %83 = vmatprep.mubr.bf16.mxu0 0
    %84 = vmatmul.mubr.bf16.gmra.mrb[0].mxu0 %v49
    %v85 = vpop.f32.mrb[0].mxu0
    %v86 = vadd.f32 0.0, %v85
    %v87 = vpop.f32.mrb[0].mxu0
    %v88 = vpop.f32.mrb[0].mxu0
    %v89 = vadd.f32 0.0, %v88
    %v90 = vpop.f32.mrb[0].mxu0
    %91 = vdwg.mxu0
    %v92 = vadd.f32 %v22, %v86
    %v93 = vadd.f32 %v23, %v89
    %94 = vst [vmem:[#allocation2] sm:$0xff] %v92
    %95 = vst [vmem:[#allocation2 + $0x8] sm:$0xff] %v93
    // Predicated region
    $region18: #{trafica_pretrain_forward.25} parent=1 // pred_check
      %p96 = pneg %p16
    $region19: #{trafica_pretrain_forward.25} parent=1 // pred_check_branch
      %98 = sbr.rel (%p96) target = $region21
    $region20: #{trafica_pretrain_forward.25} parent=1 // pred_region
      %v99 = vld [vmem:[#allocation2] sm:$0xff]
      %v100 = vld [vmem:[#allocation2 + $0x8] sm:$0xff]
      %v101 = vld [vmem:[%s2] sm:$0x1]
      %v103 = vlaneseq
      %v104 = vshrl.u32 %v103, 7
      %v105 = vsub.s32 0, %v104
      %v106 = vrot.slane %v101, %v105
      %v108 = vadd.f32 %v99, %v106
      %v109 = vadd.f32 %v100, %v106
      %110 = vst [vmem:[#allocation3] sm:$0xff] %v108
      %111 = vst [vmem:[#allocation3 + $0x8] sm:$0xff] %v109
    $region21: #{trafica_pretrain_forward.25} parent=1 // pred_fallthru
      _
    // Predicated region
    $region22: #{trafica_pretrain_forward.25} parent=1 // pred_check
      _
    $region23: #{trafica_pretrain_forward.25} parent=1 // pred_check_branch
      %113 = sbr.rel (0) target = $region25
    $region24: #{trafica_pretrain_forward.25} parent=1 // pred_region
      %s115 = ssub.s32 256, 256
      %116 = vsyncadd [#allocation4], %s115
      %s117 = sshll.u32 [#allocation3], 4
      %s118 = int_to_ptr.vmem [resolvable:$true] %s117
      %123 = dma.vmem_to_hbm [thread:$0]  %s118, 256, %s3, [#allocation4], 128, 128, 8
    $region25: #{trafica_pretrain_forward.25} parent=1 // pred_fallthru
      _
    // Predicated region
    $region26: #{trafica_pretrain_forward.25} parent=1 // pred_check
      _
    $region27: #{trafica_pretrain_forward.25} parent=1 // pred_check_branch
      %125 = sbr.rel (0) target = $region29
    $region28: #{trafica_pretrain_forward.25} parent=1 // pred_region
      %126 = dma.done [#allocation4], 256
    $region29: #{trafica_pretrain_forward.25} parent=1 // pred_fallthru
      _
    %127 = vsyncpa [#allocation4], 1

</llo_original>
